<compile_context>
chip_gen: v6e
topology: v6e:2x2x1
jax: 0.10.0
libtpu: 0.0.40
codegen_flags: <defaults>
</compile_context>

<pallas_src>
from functools import partial

import jax
import jax.numpy as jnp
import numpy as np
from jax import lax
from jax.experimental import pallas as pl
from jax.experimental.pallas import tpu as pltpu

PAD_INDEX = 0
LN_EPS = 1e-5


# ----------------------------------------------------------------------------
# Fused encoder-layer kernel
# ----------------------------------------------------------------------------
def _layer_norm(x, gamma, beta, eps):
    mean = jnp.mean(x, axis=-1, keepdims=True)
    var = jnp.mean((x - mean) ** 2, axis=-1, keepdims=True)
    return (x - mean) * lax.rsqrt(var + eps) * gamma + beta


def _encoder_layer_kernel(
    x_ref, mask_ref,
    wqkv_ref, bqkv_ref,
    wo_ref, bo_ref, ln1_g_ref, ln1_b_ref,
    w1_ref, b1_ref, w2_ref, b2_ref, ln2_g_ref, ln2_b_ref,
    out_ref, attn_ref,
    *, n_head, d_k, d_v, scale, eps,
):
    # x: [1, L, D] block for this batch element; mask: [1, L, L] (1.0 == masked)
    x = x_ref[0].astype(jnp.float32)            # [L, D]
    m = mask_ref[0]                             # [L, L]

    # ---- 1. fused Q|K|V projection (one MXU matmul) ----
    qkv = jnp.dot(x, wqkv_ref[...], preferred_element_type=jnp.float32) + bqkv_ref[...]
    q_off = 0
    k_off = n_head * d_k
    v_off = 2 * n_head * d_k

    # ---- 2. multi-head scaled-dot attention (heads statically unrolled) ----
    # context @ W_O == sum_h ctx_h @ W_O[h*d_v:(h+1)*d_v, :]  -> no head concat
    o = jnp.zeros_like(x)
    for h in range(n_head):
        q = qkv[:, q_off + h * d_k: q_off + (h + 1) * d_k]
        k = qkv[:, k_off + h * d_k: k_off + (h + 1) * d_k]
        v = qkv[:, v_off + h * d_v: v_off + (h + 1) * d_v]
        scores = lax.dot_general(q, k, (((1,), (1,)), ((), ())),
                                 preferred_element_type=jnp.float32) * scale
        scores = jnp.where(m > 0, jnp.float32(-1e9), scores)   # masked_fill
        scores = scores - jnp.max(scores, axis=-1, keepdims=True)
        e = jnp.exp(scores)
        w = e * pl.reciprocal(jnp.sum(e, axis=-1, keepdims=True), approx=True)
        attn_ref[0, h] = w.astype(attn_ref.dtype)
        ctx = jnp.dot(w, v, preferred_element_type=jnp.float32)         # [L, d_v]
        o = o + jnp.dot(ctx, wo_ref[h * d_v:(h + 1) * d_v, :],
                        preferred_element_type=jnp.float32)

    # ---- 3. output-projection epilogue: bias + residual + LayerNorm ----
    y = _layer_norm(o + bo_ref[...] + x, ln1_g_ref[...], ln1_b_ref[...], eps)

    # ---- 4. position-wise FFN, hidden stays in VMEM; epilogue fused ----
    h1 = jnp.dot(y, w1_ref[...], preferred_element_type=jnp.float32) + b1_ref[...]
    h1 = jnp.maximum(h1, 0.0)
    o2 = jnp.dot(h1, w2_ref[...], preferred_element_type=jnp.float32) + b2_ref[...]
    z = _layer_norm(o2 + y, ln2_g_ref[...], ln2_b_ref[...], eps)

    out_ref[0] = z.astype(out_ref.dtype)


def _fullspec(arr):
    # whole 2-D parameter array resident in VMEM, same block for every grid step
    return pl.BlockSpec(arr.shape, lambda b: (0, 0))


def encoder_layer(p, x, mask_f, n_head, d_k, d_v):
    """x: [B, L, d_model], mask_f: [B, L, L] float32 (1.0 == masked)."""
    B, L, D = x.shape
    H = n_head
    scale = float(1.0 / np.sqrt(d_k))

    out, attn = pl.pallas_call(
        partial(_encoder_layer_kernel, n_head=H, d_k=d_k, d_v=d_v,
                scale=scale, eps=LN_EPS),
        out_shape=(
            jax.ShapeDtypeStruct((B, L, D), jnp.float32),
            jax.ShapeDtypeStruct((B, H, L, L), jnp.float32),
        ),
        grid=(B,),
        in_specs=[
            pl.BlockSpec((1, L, D), lambda b: (b, 0, 0)),
            pl.BlockSpec((1, L, L), lambda b: (b, 0, 0)),
            _fullspec(p["wqkv"]), _fullspec(p["bqkv"]),
            _fullspec(p["wo"]), _fullspec(p["bo"]),
            _fullspec(p["ln1_g"]), _fullspec(p["ln1_b"]),
            _fullspec(p["w1"]), _fullspec(p["b1"]),
            _fullspec(p["w2"]), _fullspec(p["b2"]),
            _fullspec(p["ln2_g"]), _fullspec(p["ln2_b"]),
        ],
        out_specs=(
            pl.BlockSpec((1, L, D), lambda b: (b, 0, 0)),
            pl.BlockSpec((1, H, L, L), lambda b: (b, 0, 0, 0)),
        ),
        compiler_params=pltpu.CompilerParams(
            dimension_semantics=("parallel",)),   # batch axis shards across TCs (v7x)
    )(x, mask_f,
      p["wqkv"], p["bqkv"], p["wo"], p["bo"], p["ln1_g"], p["ln1_b"],
      p["w1"], p["b1"], p["w2"], p["b2"], p["ln2_g"], p["ln2_b"])
    return out, attn


# ----------------------------------------------------------------------------
# Mask helper + encoder stack (glue, plain JAX)
# ----------------------------------------------------------------------------
def get_attn_mask(seq_q, seq_k):
    l_q = seq_q.shape[-1]
    m = (seq_k == PAD_INDEX)[:, None, :]
    return jnp.broadcast_to(m, (seq_q.shape[0], l_q, seq_k.shape[-1]))


def encoder_share_embedding(params, enc_inputs, src_seq, n_head, d_k, d_v):
    mask_f = get_attn_mask(src_seq, src_seq).astype(jnp.float32)
    enc_output_list, attn_weight_list = [], []
    enc_output = enc_inputs
    for layer_p in params["layers"]:
        enc_output, attn = encoder_layer(layer_p, enc_output, mask_f,
                                         n_head, d_k, d_v)
        enc_output_list.append(enc_output)
        # attn is [B, n_head, Lq, Lk] == stacked per-head weight list of the ref.
        attn_weight_list.append(attn)
    return enc_output_list, attn_weight_list


# ----------------------------------------------------------------------------
# Deterministic parameter init (W stored as [in, out]; QKV pre-fused)
# ----------------------------------------------------------------------------
def init_layer_params(key, n_head, d_k, d_v, d_model, d_inner):
    ks = jax.random.split(key, 4)
    s = 0.02
    qkv_width = n_head * (2 * d_k + d_v)   # [ Q(H*d_k) | K(H*d_k) | V(H*d_v) ]
    return {
        "wqkv": s * jax.random.normal(ks[0], (d_model, qkv_width), jnp.float32),
        "bqkv": jnp.zeros((1, qkv_width), jnp.float32),
        "wo": s * jax.random.normal(ks[1], (n_head * d_v, d_model), jnp.float32),
        "bo": jnp.zeros((1, d_model), jnp.float32),
        "ln1_g": jnp.ones((1, d_model), jnp.float32),
        "ln1_b": jnp.zeros((1, d_model), jnp.float32),
        "w1": s * jax.random.normal(ks[2], (d_model, d_inner), jnp.float32),
        "b1": jnp.zeros((1, d_inner), jnp.float32),
        "w2": s * jax.random.normal(ks[3], (d_inner, d_model), jnp.float32),
        "b2": jnp.zeros((1, d_model), jnp.float32),
        "ln2_g": jnp.ones((1, d_model), jnp.float32),
        "ln2_b": jnp.zeros((1, d_model), jnp.float32),
    }


def init_encoder_params(key, n_layer, n_head, d_k, d_v, d_model, d_inner):
    keys = jax.random.split(key, n_layer)
    return {"layers": [init_layer_params(k, n_head, d_k, d_v, d_model, d_inner)
                       for k in keys]}


# ----------------------------------------------------------------------------
if __name__ == "__main__":
    n_layer, n_head, d_k, d_v, d_model, d_inner = 2, 2, 8, 8, 32, 64
    batch, src_len = 2, 8

    root = jax.random.PRNGKey(0)
    kp, ke, ks_ = jax.random.split(root, 3)

    params = init_encoder_params(kp, n_layer, n_head, d_k, d_v, d_model, d_inner)

    enc_inputs = jax.random.normal(ke, (batch, src_len, d_model), jnp.float32)
    # token-id sequences with trailing padding (pad_index == 0)
    src_seq = jax.random.randint(ks_, (batch, src_len), 1, 100).at[:, -2:].set(PAD_INDEX)

    enc_out_list, attn_list = encoder_share_embedding(
        params, enc_inputs, src_seq, n_head, d_k, d_v)

    for a in enc_out_list + attn_list:
        jax.block_until_ready(a)

    assert len(enc_out_list) == n_layer and len(attn_list) == n_layer
    assert enc_out_list[-1].shape == (batch, src_len, d_model)
    assert attn_list[0].shape == (batch, n_head, src_len, src_len)
    assert all(bool(jnp.all(jnp.isfinite(o))) for o in enc_out_list)
    assert all(bool(jnp.all(jnp.isfinite(a))) for a in attn_list)
    # TODO(synk): at production sizes, tile the M=B*L / d_inner dims with BlockSpec
    # grids (and bf16 weights) instead of whole-sequence blocks; re-derive tile
    # budgets per chip (halve + vmem_limit_bytes on v7x, 256-aligned on v6e,
    # 128-aligned on v5e).
    print("KERNEL_OK")
</pallas_src>

<mosaic_0001>
module attributes {stable_mosaic.version = 11 : i64} {
  func.func @_encoder_layer_kernel(%arg0: i32, %arg1: memref<1x8x32xf32, #tpu.memory_space<vmem>>, %arg2: memref<1x8x8xf32, #tpu.memory_space<vmem>>, %arg3: memref<32x48xf32, #tpu.memory_space<vmem>>, %arg4: memref<1x48xf32, #tpu.memory_space<vmem>>, %arg5: memref<16x32xf32, #tpu.memory_space<vmem>>, %arg6: memref<1x32xf32, #tpu.memory_space<vmem>>, %arg7: memref<1x32xf32, #tpu.memory_space<vmem>>, %arg8: memref<1x32xf32, #tpu.memory_space<vmem>>, %arg9: memref<32x64xf32, #tpu.memory_space<vmem>>, %arg10: memref<1x64xf32, #tpu.memory_space<vmem>>, %arg11: memref<64x32xf32, #tpu.memory_space<vmem>>, %arg12: memref<1x32xf32, #tpu.memory_space<vmem>>, %arg13: memref<1x32xf32, #tpu.memory_space<vmem>>, %arg14: memref<1x32xf32, #tpu.memory_space<vmem>>, %arg15: memref<1x8x32xf32, #tpu.memory_space<vmem>>, %arg16: memref<1x2x8x8xf32, #tpu.memory_space<vmem>>) attributes {dimension_semantics = [#tpu.dimension_semantics<parallel>], iteration_bounds = array<i64: 2>, scalar_prefetch = 0 : i64, scratch_operands = 0 : i64, tpu.core_type = #tpu.core_type<tc>, window_params = [{transform_indices = @transform_0, window_bounds = array<i64: 1, 8, 32>}, {transform_indices = @transform_1, window_bounds = array<i64: 1, 8, 8>}, {pipeline_mode = #tpu.pipeline_mode<synchronous>, transform_indices = @transform_2, window_bounds = array<i64: 32, 48>}, {pipeline_mode = #tpu.pipeline_mode<synchronous>, transform_indices = @transform_3, window_bounds = array<i64: 1, 48>}, {pipeline_mode = #tpu.pipeline_mode<synchronous>, transform_indices = @transform_4, window_bounds = array<i64: 16, 32>}, {pipeline_mode = #tpu.pipeline_mode<synchronous>, transform_indices = @transform_5, window_bounds = array<i64: 1, 32>}, {pipeline_mode = #tpu.pipeline_mode<synchronous>, transform_indices = @transform_6, window_bounds = array<i64: 1, 32>}, {pipeline_mode = #tpu.pipeline_mode<synchronous>, transform_indices = @transform_7, window_bounds = array<i64: 1, 32>}, {pipeline_mode = #tpu.pipeline_mode<synchronous>, transform_indices = @transform_8, window_bounds = array<i64: 32, 64>}, {pipeline_mode = #tpu.pipeline_mode<synchronous>, transform_indices = @transform_9, window_bounds = array<i64: 1, 64>}, {pipeline_mode = #tpu.pipeline_mode<synchronous>, transform_indices = @transform_10, window_bounds = array<i64: 64, 32>}, {pipeline_mode = #tpu.pipeline_mode<synchronous>, transform_indices = @transform_11, window_bounds = array<i64: 1, 32>}, {pipeline_mode = #tpu.pipeline_mode<synchronous>, transform_indices = @transform_12, window_bounds = array<i64: 1, 32>}, {pipeline_mode = #tpu.pipeline_mode<synchronous>, transform_indices = @transform_13, window_bounds = array<i64: 1, 32>}, {transform_indices = @transform_14, window_bounds = array<i64: 1, 8, 32>}, {transform_indices = @transform_15, window_bounds = array<i64: 1, 2, 8, 8>}]} {
    %c0 = arith.constant 0 : index
    %c0_0 = arith.constant 0 : index
    %c0_1 = arith.constant 0 : index
    %0 = vector.load %arg1[%c0, %c0_0, %c0_1] : memref<1x8x32xf32, #tpu.memory_space<vmem>>, vector<1x8x32xf32>
    %1 = vector.shape_cast %0 : vector<1x8x32xf32> to vector<8x32xf32>
    %c0_2 = arith.constant 0 : index
    %c0_3 = arith.constant 0 : index
    %c0_4 = arith.constant 0 : index
    %2 = vector.load %arg2[%c0_2, %c0_3, %c0_4] : memref<1x8x8xf32, #tpu.memory_space<vmem>>, vector<1x8x8xf32>
    %3 = vector.shape_cast %2 : vector<1x8x8xf32> to vector<8x8xf32>
    %c0_5 = arith.constant 0 : index
    %c0_6 = arith.constant 0 : index
    %4 = vector.load %arg3[%c0_5, %c0_6] : memref<32x48xf32, #tpu.memory_space<vmem>>, vector<32x48xf32>
    %cst = arith.constant dense<0.000000e+00> : vector<8x48xf32>
    %5 = tpu.matmul %1, %4, %cst {dimension_numbers = #tpu.dot_dimension_numbers<[1], [0], [0], [1], [0, 0, 1, 1], [], []>} : vector<8x32xf32>, vector<32x48xf32>, vector<8x48xf32> -> vector<8x48xf32>
    %c0_7 = arith.constant 0 : index
    %c0_8 = arith.constant 0 : index
    %6 = vector.load %arg4[%c0_7, %c0_8] : memref<1x48xf32, #tpu.memory_space<vmem>>, vector<1x48xf32>
    %7 = vector.broadcast %6 : vector<1x48xf32> to vector<8x48xf32>
    %8 = arith.addf %5, %7 : vector<8x48xf32>
    %cst_9 = arith.constant 0.000000e+00 : f32
    %9 = vector.broadcast %cst_9 : f32 to vector<8x32xf32>
    %10 = vector.extract_strided_slice %8 {offsets = [0, 0], sizes = [8, 8], strides = [1, 1]} : vector<8x48xf32> to vector<8x8xf32>
    %11 = vector.extract_strided_slice %8 {offsets = [0, 16], sizes = [8, 8], strides = [1, 1]} : vector<8x48xf32> to vector<8x8xf32>
    %12 = vector.extract_strided_slice %8 {offsets = [0, 32], sizes = [8, 8], strides = [1, 1]} : vector<8x48xf32> to vector<8x8xf32>
    %cst_10 = arith.constant dense<0.000000e+00> : vector<8x8xf32>
    %13 = tpu.matmul %10, %11, %cst_10 {dimension_numbers = #tpu.dot_dimension_numbers<[1], [1], [0], [0], [0, 0, 1, 0], [], []>} : vector<8x8xf32>, vector<8x8xf32>, vector<8x8xf32> -> vector<8x8xf32>
    %cst_11 = arith.constant 0.353553385 : f32
    %14 = vector.broadcast %cst_11 : f32 to vector<8x8xf32>
    %15 = arith.mulf %13, %14 : vector<8x8xf32>
    %cst_12 = arith.constant 0.000000e+00 : f32
    %16 = vector.broadcast %cst_12 : f32 to vector<8x8xf32>
    %17 = arith.cmpf ogt, %3, %16 : vector<8x8xf32>
    %cst_13 = arith.constant -1.000000e+09 : f32
    %18 = vector.broadcast %cst_13 : f32 to vector<8x8xf32>
    %19 = arith.select %17, %18, %15 : vector<8x8xi1>, vector<8x8xf32>
    %cst_14 = arith.constant dense<0xFF800000> : vector<8xf32>
    %20 = vector.multi_reduction <maximumf>, %19, %cst_14 [1] : vector<8x8xf32> to vector<8xf32>
    %21 = vector.shape_cast %20 : vector<8xf32> to vector<8x1xf32>
    %22 = vector.broadcast %21 : vector<8x1xf32> to vector<8x8xf32>
    %23 = arith.subf %19, %22 : vector<8x8xf32>
    %24 = math.exp %23 : vector<8x8xf32>
    %cst_15 = arith.constant dense<0.000000e+00> : vector<8xf32>
    %25 = vector.multi_reduction <add>, %24, %cst_15 [1] : vector<8x8xf32> to vector<8xf32>
    %26 = vector.shape_cast %25 : vector<8xf32> to vector<8x1xf32>
    %27 = tpu.reciprocal %26 {approx = true} : vector<8x1xf32> -> vector<8x1xf32>
    %28 = vector.broadcast %27 : vector<8x1xf32> to vector<8x8xf32>
    %29 = arith.mulf %24, %28 : vector<8x8xf32>
    %c0_16 = arith.constant 0 : index
    %c0_17 = arith.constant 0 : index
    %c0_18 = arith.constant 0 : index
    %c0_19 = arith.constant 0 : index
    %30 = vector.load %arg16[%c0_16, %c0_17, %c0_18, %c0_19] : memref<1x2x8x8xf32, #tpu.memory_space<vmem>>, vector<1x1x8x8xf32>
    %31 = vector.shape_cast %30 : vector<1x1x8x8xf32> to vector<8x8xf32>
    %32 = vector.shape_cast %29 : vector<8x8xf32> to vector<1x1x8x8xf32>
    tpu.vector_store %arg16[%c0_16, %c0_17, %c0_18, %c0_19], %32 {strides = array<i32>} : memref<1x2x8x8xf32, #tpu.memory_space<vmem>>, vector<1x1x8x8xf32>,
    %cst_20 = arith.constant dense<0.000000e+00> : vector<8x8xf32>
    %33 = tpu.matmul %29, %12, %cst_20 {dimension_numbers = #tpu.dot_dimension_numbers<[1], [0], [0], [1], [0, 0, 1, 1], [], []>} : vector<8x8xf32>, vector<8x8xf32>, vector<8x8xf32> -> vector<8x8xf32>
    %c0_21 = arith.constant 0 : index
    %c0_22 = arith.constant 0 : index
    %34 = vector.load %arg5[%c0_21, %c0_22] : memref<16x32xf32, #tpu.memory_space<vmem>>, vector<8x32xf32>
    %cst_23 = arith.constant dense<0.000000e+00> : vector<8x32xf32>
    %35 = tpu.matmul %33, %34, %cst_23 {dimension_numbers = #tpu.dot_dimension_numbers<[1], [0], [0], [1], [0, 0, 1, 1], [], []>} : vector<8x8xf32>, vector<8x32xf32>, vector<8x32xf32> -> vector<8x32xf32>
    %36 = arith.addf %9, %35 : vector<8x32xf32>
    %37 = vector.extract_strided_slice %8 {offsets = [0, 8], sizes = [8, 8], strides = [1, 1]} : vector<8x48xf32> to vector<8x8xf32>
    %38 = vector.extract_strided_slice %8 {offsets = [0, 24], sizes = [8, 8], strides = [1, 1]} : vector<8x48xf32> to vector<8x8xf32>
    %39 = vector.extract_strided_slice %8 {offsets = [0, 40], sizes = [8, 8], strides = [1, 1]} : vector<8x48xf32> to vector<8x8xf32>
    %cst_24 = arith.constant dense<0.000000e+00> : vector<8x8xf32>
    %40 = tpu.matmul %37, %38, %cst_24 {dimension_numbers = #tpu.dot_dimension_numbers<[1], [1], [0], [0], [0, 0, 1, 0], [], []>} : vector<8x8xf32>, vector<8x8xf32>, vector<8x8xf32> -> vector<8x8xf32>
    %cst_25 = arith.constant 0.353553385 : f32
    %41 = vector.broadcast %cst_25 : f32 to vector<8x8xf32>
    %42 = arith.mulf %40, %41 : vector<8x8xf32>
    %cst_26 = arith.constant 0.000000e+00 : f32
    %43 = vector.broadcast %cst_26 : f32 to vector<8x8xf32>
    %44 = arith.cmpf ogt, %3, %43 : vector<8x8xf32>
    %cst_27 = arith.constant -1.000000e+09 : f32
    %45 = vector.broadcast %cst_27 : f32 to vector<8x8xf32>
    %46 = arith.select %44, %45, %42 : vector<8x8xi1>, vector<8x8xf32>
    %cst_28 = arith.constant dense<0xFF800000> : vector<8xf32>
    %47 = vector.multi_reduction <maximumf>, %46, %cst_28 [1] : vector<8x8xf32> to vector<8xf32>
    %48 = vector.shape_cast %47 : vector<8xf32> to vector<8x1xf32>
    %49 = vector.broadcast %48 : vector<8x1xf32> to vector<8x8xf32>
    %50 = arith.subf %46, %49 : vector<8x8xf32>
    %51 = math.exp %50 : vector<8x8xf32>
    %cst_29 = arith.constant dense<0.000000e+00> : vector<8xf32>
    %52 = vector.multi_reduction <add>, %51, %cst_29 [1] : vector<8x8xf32> to vector<8xf32>
    %53 = vector.shape_cast %52 : vector<8xf32> to vector<8x1xf32>
    %54 = tpu.reciprocal %53 {approx = true} : vector<8x1xf32> -> vector<8x1xf32>
    %55 = vector.broadcast %54 : vector<8x1xf32> to vector<8x8xf32>
    %56 = arith.mulf %51, %55 : vector<8x8xf32>
    %c0_30 = arith.constant 0 : index
    %c1 = arith.constant 1 : index
    %c0_31 = arith.constant 0 : index
    %c0_32 = arith.constant 0 : index
    %57 = vector.load %arg16[%c0_30, %c1, %c0_31, %c0_32] : memref<1x2x8x8xf32, #tpu.memory_space<vmem>>, vector<1x1x8x8xf32>
    %58 = vector.shape_cast %57 : vector<1x1x8x8xf32> to vector<8x8xf32>
    %59 = vector.shape_cast %56 : vector<8x8xf32> to vector<1x1x8x8xf32>
    tpu.vector_store %arg16[%c0_30, %c1, %c0_31, %c0_32], %59 {strides = array<i32>} : memref<1x2x8x8xf32, #tpu.memory_space<vmem>>, vector<1x1x8x8xf32>,
    %cst_33 = arith.constant dense<0.000000e+00> : vector<8x8xf32>
    %60 = tpu.matmul %56, %39, %cst_33 {dimension_numbers = #tpu.dot_dimension_numbers<[1], [0], [0], [1], [0, 0, 1, 1], [], []>} : vector<8x8xf32>, vector<8x8xf32>, vector<8x8xf32> -> vector<8x8xf32>
    %c8 = arith.constant 8 : index
    %c0_34 = arith.constant 0 : index
    %61 = vector.load %arg5[%c8, %c0_34] : memref<16x32xf32, #tpu.memory_space<vmem>>, vector<8x32xf32>
    %cst_35 = arith.constant dense<0.000000e+00> : vector<8x32xf32>
    %62 = tpu.matmul %60, %61, %cst_35 {dimension_numbers = #tpu.dot_dimension_numbers<[1], [0], [0], [1], [0, 0, 1, 1], [], []>} : vector<8x8xf32>, vector<8x32xf32>, vector<8x32xf32> -> vector<8x32xf32>
    %63 = arith.addf %36, %62 : vector<8x32xf32>
    %c0_36 = arith.constant 0 : index
    %c0_37 = arith.constant 0 : index
    %64 = vector.load %arg6[%c0_36, %c0_37] : memref<1x32xf32, #tpu.memory_space<vmem>>, vector<1x32xf32>
    %65 = vector.broadcast %64 : vector<1x32xf32> to vector<8x32xf32>
    %66 = arith.addf %63, %65 : vector<8x32xf32>
    %67 = arith.addf %66, %1 : vector<8x32xf32>
    %c0_38 = arith.constant 0 : index
    %c0_39 = arith.constant 0 : index
    %68 = vector.load %arg7[%c0_38, %c0_39] : memref<1x32xf32, #tpu.memory_space<vmem>>, vector<1x32xf32>
    %c0_40 = arith.constant 0 : index
    %c0_41 = arith.constant 0 : index
    %69 = vector.load %arg8[%c0_40, %c0_41] : memref<1x32xf32, #tpu.memory_space<vmem>>, vector<1x32xf32>
    %cst_42 = arith.constant dense<0.000000e+00> : vector<8xf32>
    %70 = vector.multi_reduction <add>, %67, %cst_42 [1] : vector<8x32xf32> to vector<8xf32>
    %71 = vector.shape_cast %70 : vector<8xf32> to vector<8x1xf32>
    %cst_43 = arith.constant 3.200000e+01 : f32
    %72 = vector.broadcast %cst_43 : f32 to vector<8x1xf32>
    %73 = arith.divf %71, %72 : vector<8x1xf32>
    %74 = vector.broadcast %73 : vector<8x1xf32> to vector<8x32xf32>
    %75 = arith.subf %67, %74 : vector<8x32xf32>
    %76 = arith.mulf %75, %75 : vector<8x32xf32>
    %cst_44 = arith.constant dense<0.000000e+00> : vector<8xf32>
    %77 = vector.multi_reduction <add>, %76, %cst_44 [1] : vector<8x32xf32> to vector<8xf32>
    %78 = vector.shape_cast %77 : vector<8xf32> to vector<8x1xf32>
    %cst_45 = arith.constant 3.200000e+01 : f32
    %79 = vector.broadcast %cst_45 : f32 to vector<8x1xf32>
    %80 = arith.divf %78, %79 : vector<8x1xf32>
    %81 = vector.broadcast %73 : vector<8x1xf32> to vector<8x32xf32>
    %82 = arith.subf %67, %81 : vector<8x32xf32>
    %cst_46 = arith.constant 9.99999974E-6 : f32
    %83 = vector.broadcast %cst_46 : f32 to vector<8x1xf32>
    %84 = arith.addf %80, %83 : vector<8x1xf32>
    %85 = math.rsqrt %84 : vector<8x1xf32>
    %86 = vector.broadcast %85 : vector<8x1xf32> to vector<8x32xf32>
    %87 = arith.mulf %82, %86 : vector<8x32xf32>
    %88 = vector.broadcast %68 : vector<1x32xf32> to vector<8x32xf32>
    %89 = arith.mulf %87, %88 : vector<8x32xf32>
    %90 = vector.broadcast %69 : vector<1x32xf32> to vector<8x32xf32>
    %91 = arith.addf %89, %90 : vector<8x32xf32>
    %c0_47 = arith.constant 0 : index
    %c0_48 = arith.constant 0 : index
    %92 = vector.load %arg9[%c0_47, %c0_48] : memref<32x64xf32, #tpu.memory_space<vmem>>, vector<32x64xf32>
    %cst_49 = arith.constant dense<0.000000e+00> : vector<8x64xf32>
    %93 = tpu.matmul %91, %92, %cst_49 {dimension_numbers = #tpu.dot_dimension_numbers<[1], [0], [0], [1], [0, 0, 1, 1], [], []>} : vector<8x32xf32>, vector<32x64xf32>, vector<8x64xf32> -> vector<8x64xf32>
    %c0_50 = arith.constant 0 : index
    %c0_51 = arith.constant 0 : index
    %94 = vector.load %arg10[%c0_50, %c0_51] : memref<1x64xf32, #tpu.memory_space<vmem>>, vector<1x64xf32>
    %95 = vector.broadcast %94 : vector<1x64xf32> to vector<8x64xf32>
    %96 = arith.addf %93, %95 : vector<8x64xf32>
    %cst_52 = arith.constant 0.000000e+00 : f32
    %97 = vector.broadcast %cst_52 : f32 to vector<8x64xf32>
    %98 = arith.maximumf %96, %97 : vector<8x64xf32>
    %c0_53 = arith.constant 0 : index
    %c0_54 = arith.constant 0 : index
    %99 = vector.load %arg11[%c0_53, %c0_54] : memref<64x32xf32, #tpu.memory_space<vmem>>, vector<64x32xf32>
    %cst_55 = arith.constant dense<0.000000e+00> : vector<8x32xf32>
    %100 = tpu.matmul %98, %99, %cst_55 {dimension_numbers = #tpu.dot_dimension_numbers<[1], [0], [0], [1], [0, 0, 1, 1], [], []>} : vector<8x64xf32>, vector<64x32xf32>, vector<8x32xf32> -> vector<8x32xf32>
    %c0_56 = arith.constant 0 : index
    %c0_57 = arith.constant 0 : index
    %101 = vector.load %arg12[%c0_56, %c0_57] : memref<1x32xf32, #tpu.memory_space<vmem>>, vector<1x32xf32>
    %102 = vector.broadcast %101 : vector<1x32xf32> to vector<8x32xf32>
    %103 = arith.addf %100, %102 : vector<8x32xf32>
    %104 = arith.addf %103, %91 : vector<8x32xf32>
    %c0_58 = arith.constant 0 : index
    %c0_59 = arith.constant 0 : index
    %105 = vector.load %arg13[%c0_58, %c0_59] : memref<1x32xf32, #tpu.memory_space<vmem>>, vector<1x32xf32>
    %c0_60 = arith.constant 0 : index
    %c0_61 = arith.constant 0 : index
    %106 = vector.load %arg14[%c0_60, %c0_61] : memref<1x32xf32, #tpu.memory_space<vmem>>, vector<1x32xf32>
    %cst_62 = arith.constant dense<0.000000e+00> : vector<8xf32>
    %107 = vector.multi_reduction <add>, %104, %cst_62 [1] : vector<8x32xf32> to vector<8xf32>
    %108 = vector.shape_cast %107 : vector<8xf32> to vector<8x1xf32>
    %cst_63 = arith.constant 3.200000e+01 : f32
    %109 = vector.broadcast %cst_63 : f32 to vector<8x1xf32>
    %110 = arith.divf %108, %109 : vector<8x1xf32>
    %111 = vector.broadcast %110 : vector<8x1xf32> to vector<8x32xf32>
    %112 = arith.subf %104, %111 : vector<8x32xf32>
    %113 = arith.mulf %112, %112 : vector<8x32xf32>
    %cst_64 = arith.constant dense<0.000000e+00> : vector<8xf32>
    %114 = vector.multi_reduction <add>, %113, %cst_64 [1] : vector<8x32xf32> to vector<8xf32>
    %115 = vector.shape_cast %114 : vector<8xf32> to vector<8x1xf32>
    %cst_65 = arith.constant 3.200000e+01 : f32
    %116 = vector.broadcast %cst_65 : f32 to vector<8x1xf32>
    %117 = arith.divf %115, %116 : vector<8x1xf32>
    %118 = vector.broadcast %110 : vector<8x1xf32> to vector<8x32xf32>
    %119 = arith.subf %104, %118 : vector<8x32xf32>
    %cst_66 = arith.constant 9.99999974E-6 : f32
    %120 = vector.broadcast %cst_66 : f32 to vector<8x1xf32>
    %121 = arith.addf %117, %120 : vector<8x1xf32>
    %122 = math.rsqrt %121 : vector<8x1xf32>
    %123 = vector.broadcast %122 : vector<8x1xf32> to vector<8x32xf32>
    %124 = arith.mulf %119, %123 : vector<8x32xf32>
    %125 = vector.broadcast %105 : vector<1x32xf32> to vector<8x32xf32>
    %126 = arith.mulf %124, %125 : vector<8x32xf32>
    %127 = vector.broadcast %106 : vector<1x32xf32> to vector<8x32xf32>
    %128 = arith.addf %126, %127 : vector<8x32xf32>
    %c0_67 = arith.constant 0 : index
    %c0_68 = arith.constant 0 : index
    %c0_69 = arith.constant 0 : index
    %129 = vector.load %arg15[%c0_67, %c0_68, %c0_69] : memref<1x8x32xf32, #tpu.memory_space<vmem>>, vector<1x8x32xf32>
    %130 = vector.shape_cast %129 : vector<1x8x32xf32> to vector<8x32xf32>
    %131 = vector.shape_cast %128 : vector<8x32xf32> to vector<1x8x32xf32>
    tpu.vector_store %arg15[%c0_67, %c0_68, %c0_69], %131 {strides = array<i32>} : memref<1x8x32xf32, #tpu.memory_space<vmem>>, vector<1x8x32xf32>,
    return
  }
  func.func @transform_0(%arg0: i32) -> (i32, i32, i32) {
    %c0_i32 = arith.constant 0 : i32
    %c0_i32_0 = arith.constant 0 : i32
    %c0_i32_1 = arith.constant 0 : i32
    return %arg0, %c0_i32, %c0_i32_0 : i32, i32, i32
  }
  func.func @transform_1(%arg0: i32) -> (i32, i32, i32) {
    %c0_i32 = arith.constant 0 : i32
    %c0_i32_0 = arith.constant 0 : i32
    %c0_i32_1 = arith.constant 0 : i32
    return %arg0, %c0_i32, %c0_i32_0 : i32, i32, i32
  }
  func.func @transform_2(%arg0: i32) -> (i32, i32) {
    %c0_i32 = arith.constant 0 : i32
    %c0_i32_0 = arith.constant 0 : i32
    %c0_i32_1 = arith.constant 0 : i32
    return %c0_i32, %c0_i32_0 : i32, i32
  }
  func.func @transform_3(%arg0: i32) -> (i32, i32) {
    %c0_i32 = arith.constant 0 : i32
    %c0_i32_0 = arith.constant 0 : i32
    %c0_i32_1 = arith.constant 0 : i32
    return %c0_i32, %c0_i32_0 : i32, i32
  }
  func.func @transform_4(%arg0: i32) -> (i32, i32) {
    %c0_i32 = arith.constant 0 : i32
    %c0_i32_0 = arith.constant 0 : i32
    %c0_i32_1 = arith.constant 0 : i32
    return %c0_i32, %c0_i32_0 : i32, i32
  }
  func.func @transform_5(%arg0: i32) -> (i32, i32) {
    %c0_i32 = arith.constant 0 : i32
    %c0_i32_0 = arith.constant 0 : i32
    %c0_i32_1 = arith.constant 0 : i32
    return %c0_i32, %c0_i32_0 : i32, i32
  }
  func.func @transform_6(%arg0: i32) -> (i32, i32) {
    %c0_i32 = arith.constant 0 : i32
    %c0_i32_0 = arith.constant 0 : i32
    %c0_i32_1 = arith.constant 0 : i32
    return %c0_i32, %c0_i32_0 : i32, i32
  }
  func.func @transform_7(%arg0: i32) -> (i32, i32) {
    %c0_i32 = arith.constant 0 : i32
    %c0_i32_0 = arith.constant 0 : i32
    %c0_i32_1 = arith.constant 0 : i32
    return %c0_i32, %c0_i32_0 : i32, i32
  }
  func.func @transform_8(%arg0: i32) -> (i32, i32) {
    %c0_i32 = arith.constant 0 : i32
    %c0_i32_0 = arith.constant 0 : i32
    %c0_i32_1 = arith.constant 0 : i32
    return %c0_i32, %c0_i32_0 : i32, i32
  }
  func.func @transform_9(%arg0: i32) -> (i32, i32) {
    %c0_i32 = arith.constant 0 : i32
    %c0_i32_0 = arith.constant 0 : i32
    %c0_i32_1 = arith.constant 0 : i32
    return %c0_i32, %c0_i32_0 : i32, i32
  }
  func.func @transform_10(%arg0: i32) -> (i32, i32) {
    %c0_i32 = arith.constant 0 : i32
    %c0_i32_0 = arith.constant 0 : i32
    %c0_i32_1 = arith.constant 0 : i32
    return %c0_i32, %c0_i32_0 : i32, i32
  }
  func.func @transform_11(%arg0: i32) -> (i32, i32) {
    %c0_i32 = arith.constant 0 : i32
    %c0_i32_0 = arith.constant 0 : i32
    %c0_i32_1 = arith.constant 0 : i32
    return %c0_i32, %c0_i32_0 : i32, i32
  }
  func.func @transform_12(%arg0: i32) -> (i32, i32) {
    %c0_i32 = arith.constant 0 : i32
    %c0_i32_0 = arith.constant 0 : i32
    %c0_i32_1 = arith.constant 0 : i32
    return %c0_i32, %c0_i32_0 : i32, i32
  }
  func.func @transform_13(%arg0: i32) -> (i32, i32) {
    %c0_i32 = arith.constant 0 : i32
    %c0_i32_0 = arith.constant 0 : i32
    %c0_i32_1 = arith.constant 0 : i32
    return %c0_i32, %c0_i32_0 : i32, i32
  }
  func.func @transform_14(%arg0: i32) -> (i32, i32, i32) {
    %c0_i32 = arith.constant 0 : i32
    %c0_i32_0 = arith.constant 0 : i32
    %c0_i32_1 = arith.constant 0 : i32
    return %arg0, %c0_i32, %c0_i32_0 : i32, i32, i32
  }
  func.func @transform_15(%arg0: i32) -> (i32, i32, i32, i32) {
    %c0_i32 = arith.constant 0 : i32
    %c0_i32_0 = arith.constant 0 : i32
    %c0_i32_1 = arith.constant 0 : i32
    %c0_i32_2 = arith.constant 0 : i32
    return %arg0, %c0_i32, %c0_i32_0, %c0_i32_1 : i32, i32, i32, i32
  }
}

</mosaic_0001>

<llo_original>
// kernel: tpu_custom_call.1
$region0: #{tpu_custom_call.1}
  #allocation0 [shape = 'u32[]', space=smem, size = 0x4, offset = 0x4, fixed_abs, tag = 'smem constant byte address 0x4 - core index']
  #allocation1 [shape = 'u32[144,128]{1,0:T(1,128)}', space=vmem, size = 0x12000, scoped, tag = 'internal scratch']
  %s0 = inlined_call_operand.vmem [shape: f32[2,8,32], index: 0, kind: input, shape index: {}]
  %s1 = inlined_call_operand.vmem [shape: f32[2,8,8], index: 1, kind: input, shape index: {}]
  %s2 = inlined_call_operand.vmem [shape: f32[32,48], index: 2, kind: input, shape index: {}]
  %s3 = inlined_call_operand.vmem [shape: f32[1,48], index: 3, kind: input, shape index: {}]
  %s4 = inlined_call_operand.hbm [shape: f32[16,32], index: 4, kind: input, shape index: {}]
  %s5 = inlined_call_operand.vmem [shape: f32[1,32], index: 5, kind: input, shape index: {}]
  %s6 = inlined_call_operand.vmem [shape: f32[1,32], index: 6, kind: input, shape index: {}]
  %s7 = inlined_call_operand.vmem [shape: f32[1,32], index: 7, kind: input, shape index: {}]
  %s8 = inlined_call_operand.vmem [shape: f32[32,64], index: 8, kind: input, shape index: {}]
  %s9 = inlined_call_operand.vmem [shape: f32[1,64], index: 9, kind: input, shape index: {}]
  %s10 = inlined_call_operand.vmem [shape: f32[64,32], index: 10, kind: input, shape index: {}]
  %s11 = inlined_call_operand.vmem [shape: f32[1,32], index: 11, kind: input, shape index: {}]
  %s12 = inlined_call_operand.vmem [shape: f32[1,32], index: 12, kind: input, shape index: {}]
  %s13 = inlined_call_operand.vmem [shape: f32[1,32], index: 13, kind: input, shape index: {}]
  %s14 = inlined_call_operand.hbm [shape: f32[2,8,32], index: 14, kind: output, shape index: {0}]
  %s15 = inlined_call_operand.hbm [shape: f32[2,2,8,8], index: 15, kind: output, shape index: {1}]
  %16 = xla_tuple %s14, %s15
  %s17 = sld [smem:[#allocation0]]
  $region101: #{tpu_custom_call.1} parent=0
    _
  %s19 = ssub.s32 1, %s17
  %s20 = scalar_select 0, %s19, %s17
  $region1: #{tpu_custom_call.1} parent=0
    #allocation2 [shape = 'u8[8192]{0}', space=vmem, size = 0x2000, scoped, tag = 'input window, operand 4, single buffered']
    #allocation3 [shape = 's32[2]{0}', space=sflag, size = 0x8, scoped, tag = 'scoped memory for tpu_custom_call.1']
    #allocation4 [shape = 's32[2]{0}', space=sflag, size = 0x8, scoped, tag = 'scoped memory for tpu_custom_call.1']
    #allocation5 [shape = 'u8[8192]{0}', space=vmem, size = 0x2000, scoped, tag = 'output window, operand 0']
    #allocation6 [shape = 'u8[16384]{0}', space=vmem, size = 0x4000, scoped, tag = 'output window, operand 1']
    #allocation7 [shape = 's32[2]{0}', space=sflag, size = 0x8, scoped, tag = 'scoped memory for tpu_custom_call.1']
    %21 = vsyncpa [#allocation3], 0
    %22 = vsyncpa [#allocation4], 0
    %s23 = scalar_lea.sflag [#allocation4], 1
    %24 = vsyncpa %s23, 0
    %25 = vsyncpa [#allocation7], 0
    %s26 = scalar_lea.sflag [#allocation7], 1
    %27 = vsyncpa %s26, 0
    loop: start=0, step=1, limit=4
    $region2: #{tpu_custom_call.1} parent=1 // loop_pre_header
      _
    $region3: #{tpu_custom_call.1} parent=1 // loop_header
      %s29 = sphi 0, %s33
      %p30 = scmp.ge.s32.totalorder %s29, 4
      %s39 = sphi 0, %s41
      %s42 = sphi 0, %s39
      %s43 = sphi 0, %s42
      %s59 = sphi 0, %s43
      %s65 = sphi 0, %s67
      %s68 = sphi 0, %s65
      %s69 = sphi 0, %s68
      %s85 = sphi 0, %s69
      %s89 = sphi 0, %s89
      %s91 = sphi 0, %s89
      %s92 = sphi 0, %s91
      %s106 = sphi 0, %s92
      %s110 = sphi 0, %s110
      %s112 = sphi 0, %s110
      %s113 = sphi 0, %s112
      %s127 = sphi 0, %s113
      %s131 = sphi 0, %s131
      %s133 = sphi 0, %s131
      %s134 = sphi 0, %s133
      %s148 = sphi 0, %s134
      %s152 = sphi 0, %s152
      %s154 = sphi 0, %s152
      %s155 = sphi 0, %s154
      %s169 = sphi 0, %s155
      %s173 = sphi 0, %s173
      %s175 = sphi 0, %s173
      %s176 = sphi 0, %s175
      %s190 = sphi 0, %s176
      %s194 = sphi 0, %s194
      %s196 = sphi 0, %s194
      %s197 = sphi 0, %s196
      %s211 = sphi 0, %s197
      %s215 = sphi 0, %s215
      %s217 = sphi 0, %s215
      %s218 = sphi 0, %s217
      %s232 = sphi 0, %s218
      %s236 = sphi 0, %s236
      %s238 = sphi 0, %s236
      %s239 = sphi 0, %s238
      %s253 = sphi 0, %s239
      %s257 = sphi 0, %s257
      %s259 = sphi 0, %s257
      %s260 = sphi 0, %s259
      %s274 = sphi 0, %s260
      %s278 = sphi 0, %s278
      %s280 = sphi 0, %s278
      %s281 = sphi 0, %s280
      %s295 = sphi 0, %s281
      %s299 = sphi 0, %s299
      %s301 = sphi 0, %s299
      %s302 = sphi 0, %s301
      %s316 = sphi 0, %s302
      %s320 = sphi 0, %s320
      %s322 = sphi 0, %s320
      %s323 = sphi 0, %s322
      %s337 = sphi 0, %s323
      %s343 = sphi 0, %s345
      %s346 = sphi 0, %s343
      %s347 = sphi 0, %s346
      %s363 = sphi 0, %s347
      %s369 = sphi 0, %s371
      %s372 = sphi 0, %s369
      %s373 = sphi 0, %s372
      %s389 = sphi 0, %s373
    $region4: #{tpu_custom_call.1} parent=1 // loop_header_branch
      %32 = sbr.rel (%p30) target = $region8
    $region5: #{tpu_custom_call.1} parent=1 // loop_body
      %s34 = ssub.s32 %s29, 1
      %s35 = ssub.s32 %s29, 2
      %s36 = sadd.s32 %s29, 1
      %s37 = ssub.s32 %s29, %s36
      %p38 = scmp.eq.s32.totalorder %s37, 0
      %s40 = sadd.s32 %s39, 1
      %s41 = scalar_select %p38, %s39, %s40
      %p44 = pneg %p38
      %p45 = scmp.eq.s32.totalorder %s29, 1
      %p46 = por %p44, %p45
      %p47 = scmp.ne.s32.totalorder %s39, %s42
      %p48 = scmp.eq.s32.totalorder %s29, 0
      %p49 = por %p47, %p48
      %p50 = scmp.ne.s32.totalorder %s39, %s42
      %p51 = scmp.eq.s32.totalorder %s34, 1
      %p52 = por %p50, %p51
      %p53 = scmp.ne.s32.totalorder %s42, %s43
      %p54 = scmp.eq.s32.totalorder %s34, 0
      %p55 = por %p53, %p54
      %p56 = scmp.ne.s32.totalorder %s42, %s43
      %p57 = scmp.eq.s32.totalorder %s35, 1
      %p58 = por %p56, %p57
      %p60 = scmp.ne.s32.totalorder %s43, %s59
      %p61 = scmp.eq.s32.totalorder %s35, 0
      %p62 = por %p60, %p61
      %s63 = ssub.s32 %s29, %s36
      %p64 = scmp.eq.s32.totalorder %s63, 0
      %s66 = sadd.s32 %s65, 1
      %s67 = scalar_select %p64, %s65, %s66
      %p70 = pneg %p64
      %p71 = scmp.eq.s32.totalorder %s29, 1
      %p72 = por %p70, %p71
      %p73 = scmp.ne.s32.totalorder %s65, %s68
      %p74 = scmp.eq.s32.totalorder %s29, 0
      %p75 = por %p73, %p74
      %p76 = scmp.ne.s32.totalorder %s65, %s68
      %p77 = scmp.eq.s32.totalorder %s34, 1
      %p78 = por %p76, %p77
      %p79 = scmp.ne.s32.totalorder %s68, %s69
      %p80 = scmp.eq.s32.totalorder %s34, 0
      %p81 = por %p79, %p80
      %p82 = scmp.ne.s32.totalorder %s68, %s69
      %p83 = scmp.eq.s32.totalorder %s35, 1
      %p84 = por %p82, %p83
      %p86 = scmp.ne.s32.totalorder %s69, %s85
      %p87 = scmp.eq.s32.totalorder %s35, 0
      %p88 = por %p86, %p87
      %s90 = sadd.s32 %s89, 1
      %p93 = scmp.eq.s32.totalorder %s29, 1
      %p94 = scmp.ne.s32.totalorder %s89, %s91
      %p95 = scmp.eq.s32.totalorder %s29, 0
      %p96 = por %p94, %p95
      %p97 = scmp.ne.s32.totalorder %s89, %s91
      %p98 = scmp.eq.s32.totalorder %s34, 1
      %p99 = por %p97, %p98
      %p100 = scmp.ne.s32.totalorder %s91, %s92
      %p101 = scmp.eq.s32.totalorder %s34, 0
      %p102 = por %p100, %p101
      %p103 = scmp.ne.s32.totalorder %s91, %s92
      %p104 = scmp.eq.s32.totalorder %s35, 1
      %p105 = por %p103, %p104
      %p107 = scmp.ne.s32.totalorder %s92, %s106
      %p108 = scmp.eq.s32.totalorder %s35, 0
      %p109 = por %p107, %p108
      %s111 = sadd.s32 %s110, 1
      %p114 = scmp.eq.s32.totalorder %s29, 1
      %p115 = scmp.ne.s32.totalorder %s110, %s112
      %p116 = scmp.eq.s32.totalorder %s29, 0
      %p117 = por %p115, %p116
      %p118 = scmp.ne.s32.totalorder %s110, %s112
      %p119 = scmp.eq.s32.totalorder %s34, 1
      %p120 = por %p118, %p119
      %p121 = scmp.ne.s32.totalorder %s112, %s113
      %p122 = scmp.eq.s32.totalorder %s34, 0
      %p123 = por %p121, %p122
      %p124 = scmp.ne.s32.totalorder %s112, %s113
      %p125 = scmp.eq.s32.totalorder %s35, 1
      %p126 = por %p124, %p125
      %p128 = scmp.ne.s32.totalorder %s113, %s127
      %p129 = scmp.eq.s32.totalorder %s35, 0
      %p130 = por %p128, %p129
      %s132 = sadd.s32 %s131, 1
      %p135 = scmp.eq.s32.totalorder %s29, 1
      %p136 = scmp.ne.s32.totalorder %s131, %s133
      %p137 = scmp.eq.s32.totalorder %s29, 0
      %p138 = por %p136, %p137
      %p139 = scmp.ne.s32.totalorder %s131, %s133
      %p140 = scmp.eq.s32.totalorder %s34, 1
      %p141 = por %p139, %p140
      %p142 = scmp.ne.s32.totalorder %s133, %s134
      %p143 = scmp.eq.s32.totalorder %s34, 0
      %p144 = por %p142, %p143
      %p145 = scmp.ne.s32.totalorder %s133, %s134
      %p146 = scmp.eq.s32.totalorder %s35, 1
      %p147 = por %p145, %p146
      %p149 = scmp.ne.s32.totalorder %s134, %s148
      %p150 = scmp.eq.s32.totalorder %s35, 0
      %p151 = por %p149, %p150
      %s153 = sadd.s32 %s152, 1
      %p156 = scmp.eq.s32.totalorder %s29, 1
      %p157 = scmp.ne.s32.totalorder %s152, %s154
      %p158 = scmp.eq.s32.totalorder %s29, 0
      %p159 = por %p157, %p158
      %p160 = scmp.ne.s32.totalorder %s152, %s154
      %p161 = scmp.eq.s32.totalorder %s34, 1
      %p162 = por %p160, %p161
      %p163 = scmp.ne.s32.totalorder %s154, %s155
      %p164 = scmp.eq.s32.totalorder %s34, 0
      %p165 = por %p163, %p164
      %p166 = scmp.ne.s32.totalorder %s154, %s155
      %p167 = scmp.eq.s32.totalorder %s35, 1
      %p168 = por %p166, %p167
      %p170 = scmp.ne.s32.totalorder %s155, %s169
      %p171 = scmp.eq.s32.totalorder %s35, 0
      %p172 = por %p170, %p171
      %s174 = sadd.s32 %s173, 1
      %p177 = scmp.eq.s32.totalorder %s29, 1
      %p178 = scmp.ne.s32.totalorder %s173, %s175
      %p179 = scmp.eq.s32.totalorder %s29, 0
      %p180 = por %p178, %p179
      %p181 = scmp.ne.s32.totalorder %s173, %s175
      %p182 = scmp.eq.s32.totalorder %s34, 1
      %p183 = por %p181, %p182
      %p184 = scmp.ne.s32.totalorder %s175, %s176
      %p185 = scmp.eq.s32.totalorder %s34, 0
      %p186 = por %p184, %p185
      %p187 = scmp.ne.s32.totalorder %s175, %s176
      %p188 = scmp.eq.s32.totalorder %s35, 1
      %p189 = por %p187, %p188
      %p191 = scmp.ne.s32.totalorder %s176, %s190
      %p192 = scmp.eq.s32.totalorder %s35, 0
      %p193 = por %p191, %p192
      %s195 = sadd.s32 %s194, 1
      %p198 = scmp.eq.s32.totalorder %s29, 1
      %p199 = scmp.ne.s32.totalorder %s194, %s196
      %p200 = scmp.eq.s32.totalorder %s29, 0
      %p201 = por %p199, %p200
      %p202 = scmp.ne.s32.totalorder %s194, %s196
      %p203 = scmp.eq.s32.totalorder %s34, 1
      %p204 = por %p202, %p203
      %p205 = scmp.ne.s32.totalorder %s196, %s197
      %p206 = scmp.eq.s32.totalorder %s34, 0
      %p207 = por %p205, %p206
      %p208 = scmp.ne.s32.totalorder %s196, %s197
      %p209 = scmp.eq.s32.totalorder %s35, 1
      %p210 = por %p208, %p209
      %p212 = scmp.ne.s32.totalorder %s197, %s211
      %p213 = scmp.eq.s32.totalorder %s35, 0
      %p214 = por %p212, %p213
      %s216 = sadd.s32 %s215, 1
      %p219 = scmp.eq.s32.totalorder %s29, 1
      %p220 = scmp.ne.s32.totalorder %s215, %s217
      %p221 = scmp.eq.s32.totalorder %s29, 0
      %p222 = por %p220, %p221
      %p223 = scmp.ne.s32.totalorder %s215, %s217
      %p224 = scmp.eq.s32.totalorder %s34, 1
      %p225 = por %p223, %p224
      %p226 = scmp.ne.s32.totalorder %s217, %s218
      %p227 = scmp.eq.s32.totalorder %s34, 0
      %p228 = por %p226, %p227
      %p229 = scmp.ne.s32.totalorder %s217, %s218
      %p230 = scmp.eq.s32.totalorder %s35, 1
      %p231 = por %p229, %p230
      %p233 = scmp.ne.s32.totalorder %s218, %s232
      %p234 = scmp.eq.s32.totalorder %s35, 0
      %p235 = por %p233, %p234
      %s237 = sadd.s32 %s236, 1
      %p240 = scmp.eq.s32.totalorder %s29, 1
      %p241 = scmp.ne.s32.totalorder %s236, %s238
      %p242 = scmp.eq.s32.totalorder %s29, 0
      %p243 = por %p241, %p242
      %p244 = scmp.ne.s32.totalorder %s236, %s238
      %p245 = scmp.eq.s32.totalorder %s34, 1
      %p246 = por %p244, %p245
      %p247 = scmp.ne.s32.totalorder %s238, %s239
      %p248 = scmp.eq.s32.totalorder %s34, 0
      %p249 = por %p247, %p248
      %p250 = scmp.ne.s32.totalorder %s238, %s239
      %p251 = scmp.eq.s32.totalorder %s35, 1
      %p252 = por %p250, %p251
      %p254 = scmp.ne.s32.totalorder %s239, %s253
      %p255 = scmp.eq.s32.totalorder %s35, 0
      %p256 = por %p254, %p255
      %s258 = sadd.s32 %s257, 1
      %p261 = scmp.eq.s32.totalorder %s29, 1
      %p262 = scmp.ne.s32.totalorder %s257, %s259
      %p263 = scmp.eq.s32.totalorder %s29, 0
      %p264 = por %p262, %p263
      %p265 = scmp.ne.s32.totalorder %s257, %s259
      %p266 = scmp.eq.s32.totalorder %s34, 1
      %p267 = por %p265, %p266
      %p268 = scmp.ne.s32.totalorder %s259, %s260
      %p269 = scmp.eq.s32.totalorder %s34, 0
      %p270 = por %p268, %p269
      %p271 = scmp.ne.s32.totalorder %s259, %s260
      %p272 = scmp.eq.s32.totalorder %s35, 1
      %p273 = por %p271, %p272
      %p275 = scmp.ne.s32.totalorder %s260, %s274
      %p276 = scmp.eq.s32.totalorder %s35, 0
      %p277 = por %p275, %p276
      %s279 = sadd.s32 %s278, 1
      %p282 = scmp.eq.s32.totalorder %s29, 1
      %p283 = scmp.ne.s32.totalorder %s278, %s280
      %p284 = scmp.eq.s32.totalorder %s29, 0
      %p285 = por %p283, %p284
      %p286 = scmp.ne.s32.totalorder %s278, %s280
      %p287 = scmp.eq.s32.totalorder %s34, 1
      %p288 = por %p286, %p287
      %p289 = scmp.ne.s32.totalorder %s280, %s281
      %p290 = scmp.eq.s32.totalorder %s34, 0
      %p291 = por %p289, %p290
      %p292 = scmp.ne.s32.totalorder %s280, %s281
      %p293 = scmp.eq.s32.totalorder %s35, 1
      %p294 = por %p292, %p293
      %p296 = scmp.ne.s32.totalorder %s281, %s295
      %p297 = scmp.eq.s32.totalorder %s35, 0
      %p298 = por %p296, %p297
      %s300 = sadd.s32 %s299, 1
      %p303 = scmp.eq.s32.totalorder %s29, 1
      %p304 = scmp.ne.s32.totalorder %s299, %s301
      %p305 = scmp.eq.s32.totalorder %s29, 0
      %p306 = por %p304, %p305
      %p307 = scmp.ne.s32.totalorder %s299, %s301
      %p308 = scmp.eq.s32.totalorder %s34, 1
      %p309 = por %p307, %p308
      %p310 = scmp.ne.s32.totalorder %s301, %s302
      %p311 = scmp.eq.s32.totalorder %s34, 0
      %p312 = por %p310, %p311
      %p313 = scmp.ne.s32.totalorder %s301, %s302
      %p314 = scmp.eq.s32.totalorder %s35, 1
      %p315 = por %p313, %p314
      %p317 = scmp.ne.s32.totalorder %s302, %s316
      %p318 = scmp.eq.s32.totalorder %s35, 0
      %p319 = por %p317, %p318
      %s321 = sadd.s32 %s320, 1
      %p324 = scmp.eq.s32.totalorder %s29, 1
      %p325 = scmp.ne.s32.totalorder %s320, %s322
      %p326 = scmp.eq.s32.totalorder %s29, 0
      %p327 = por %p325, %p326
      %p328 = scmp.ne.s32.totalorder %s320, %s322
      %p329 = scmp.eq.s32.totalorder %s34, 1
      %p330 = por %p328, %p329
      %p331 = scmp.ne.s32.totalorder %s322, %s323
      %p332 = scmp.eq.s32.totalorder %s34, 0
      %p333 = por %p331, %p332
      %p334 = scmp.ne.s32.totalorder %s322, %s323
      %p335 = scmp.eq.s32.totalorder %s35, 1
      %p336 = por %p334, %p335
      %p338 = scmp.ne.s32.totalorder %s323, %s337
      %p339 = scmp.eq.s32.totalorder %s35, 0
      %p340 = por %p338, %p339
      %s341 = ssub.s32 %s29, %s36
      %p342 = scmp.eq.s32.totalorder %s341, 0
      %s344 = sadd.s32 %s343, 1
      %s345 = scalar_select %p342, %s343, %s344
      %p348 = pneg %p342
      %p349 = scmp.eq.s32.totalorder %s29, 1
      %p350 = por %p348, %p349
      %p351 = scmp.ne.s32.totalorder %s343, %s346
      %p352 = scmp.eq.s32.totalorder %s29, 0
      %p353 = por %p351, %p352
      %p354 = scmp.ne.s32.totalorder %s343, %s346
      %p355 = scmp.eq.s32.totalorder %s34, 1
      %p356 = por %p354, %p355
      %p357 = scmp.ne.s32.totalorder %s346, %s347
      %p358 = scmp.eq.s32.totalorder %s34, 0
      %p359 = por %p357, %p358
      %p360 = scmp.ne.s32.totalorder %s346, %s347
      %p361 = scmp.eq.s32.totalorder %s35, 1
      %p362 = por %p360, %p361
      %p364 = scmp.ne.s32.totalorder %s347, %s363
      %p365 = scmp.eq.s32.totalorder %s35, 0
      %p366 = por %p364, %p365
      %s367 = ssub.s32 %s29, %s36
      %p368 = scmp.eq.s32.totalorder %s367, 0
      %s370 = sadd.s32 %s369, 1
      %s371 = scalar_select %p368, %s369, %s370
      %p374 = pneg %p368
      %p375 = scmp.eq.s32.totalorder %s29, 1
      %p376 = por %p374, %p375
      %p377 = scmp.ne.s32.totalorder %s369, %s372
      %p378 = scmp.eq.s32.totalorder %s29, 0
      %p379 = por %p377, %p378
      %p380 = scmp.ne.s32.totalorder %s369, %s372
      %p381 = scmp.eq.s32.totalorder %s34, 1
      %p382 = por %p380, %p381
      %p383 = scmp.ne.s32.totalorder %s372, %s373
      %p384 = scmp.eq.s32.totalorder %s34, 0
      %p385 = por %p383, %p384
      %p386 = scmp.ne.s32.totalorder %s372, %s373
      %p387 = scmp.eq.s32.totalorder %s35, 1
      %p388 = por %p386, %p387
      %p390 = scmp.ne.s32.totalorder %s373, %s389
      %p391 = scmp.eq.s32.totalorder %s35, 0
      %p392 = por %p390, %p391
      %p393 = scmp.le.s32.totalorder 1, %s29
      %p394 = scmp.lt.s32.totalorder %s29, 3
      %p395 = pnand %p393, %p394
      %p396 = pneg %p395
      // Predicated region
      $region9: #{tpu_custom_call.1} parent=5 // pred_check
        _
      $region10: #{tpu_custom_call.1} parent=5 // pred_check_branch
        %398 = sbr.rel (%p395) target = $region12
      $region11: #{tpu_custom_call.1} parent=5 // pred_region
        %s399 = ssub.s32 %s29, 1
        // Predicated region
        $region13: #{tpu_custom_call.1} parent=11 // pred_check
          %p400 = pneg %p102
        $region14: #{tpu_custom_call.1} parent=11 // pred_check_branch
          %402 = sbr.rel (%p400) target = $region16
        $region15: #{tpu_custom_call.1} parent=11 // pred_region
          _
        $region16: #{tpu_custom_call.1} parent=11 // pred_fallthru
          _
        // Predicated region
        $region17: #{tpu_custom_call.1} parent=11 // pred_check
          %p403 = pneg %p123
        $region18: #{tpu_custom_call.1} parent=11 // pred_check_branch
          %405 = sbr.rel (%p403) target = $region20
        $region19: #{tpu_custom_call.1} parent=11 // pred_region
          _
        $region20: #{tpu_custom_call.1} parent=11 // pred_fallthru
          _
        // Predicated region
        $region21: #{tpu_custom_call.1} parent=11 // pred_check
          %p406 = pneg %p144
        $region22: #{tpu_custom_call.1} parent=11 // pred_check_branch
          %408 = sbr.rel (%p406) target = $region24
        $region23: #{tpu_custom_call.1} parent=11 // pred_region
          %s410 = ssub.s32 256, 256
          %411 = vsyncadd [#allocation3], %s410
          %s412 = sshll.u32 [#allocation2], 4
          %s413 = int_to_ptr.vmem [resolvable:$true] %s412
          %418 = dma.hbm_to_vmem [thread:$0]  %s4, 256, %s413, [#allocation3], 128, 128, 8
        $region24: #{tpu_custom_call.1} parent=11 // pred_fallthru
          _
        // Predicated region
        $region25: #{tpu_custom_call.1} parent=11 // pred_check
          %p419 = pneg %p165
        $region26: #{tpu_custom_call.1} parent=11 // pred_check_branch
          %421 = sbr.rel (%p419) target = $region28
        $region27: #{tpu_custom_call.1} parent=11 // pred_region
          _
        $region28: #{tpu_custom_call.1} parent=11 // pred_fallthru
          _
        // Predicated region
        $region29: #{tpu_custom_call.1} parent=11 // pred_check
          %p422 = pneg %p186
        $region30: #{tpu_custom_call.1} parent=11 // pred_check_branch
          %424 = sbr.rel (%p422) target = $region32
        $region31: #{tpu_custom_call.1} parent=11 // pred_region
          _
        $region32: #{tpu_custom_call.1} parent=11 // pred_fallthru
          _
        // Predicated region
        $region33: #{tpu_custom_call.1} parent=11 // pred_check
          %p425 = pneg %p207
        $region34: #{tpu_custom_call.1} parent=11 // pred_check_branch
          %427 = sbr.rel (%p425) target = $region36
        $region35: #{tpu_custom_call.1} parent=11 // pred_region
          _
        $region36: #{tpu_custom_call.1} parent=11 // pred_fallthru
          _
        // Predicated region
        $region37: #{tpu_custom_call.1} parent=11 // pred_check
          %p428 = pneg %p228
        $region38: #{tpu_custom_call.1} parent=11 // pred_check_branch
          %430 = sbr.rel (%p428) target = $region40
        $region39: #{tpu_custom_call.1} parent=11 // pred_region
          _
        $region40: #{tpu_custom_call.1} parent=11 // pred_fallthru
          _
        // Predicated region
        $region41: #{tpu_custom_call.1} parent=11 // pred_check
          %p431 = pneg %p249
        $region42: #{tpu_custom_call.1} parent=11 // pred_check_branch
          %433 = sbr.rel (%p431) target = $region44
        $region43: #{tpu_custom_call.1} parent=11 // pred_region
          _
        $region44: #{tpu_custom_call.1} parent=11 // pred_fallthru
          _
        // Predicated region
        $region45: #{tpu_custom_call.1} parent=11 // pred_check
          %p434 = pneg %p270
        $region46: #{tpu_custom_call.1} parent=11 // pred_check_branch
          %436 = sbr.rel (%p434) target = $region48
        $region47: #{tpu_custom_call.1} parent=11 // pred_region
          _
        $region48: #{tpu_custom_call.1} parent=11 // pred_fallthru
          _
        // Predicated region
        $region49: #{tpu_custom_call.1} parent=11 // pred_check
          %p437 = pneg %p291
        $region50: #{tpu_custom_call.1} parent=11 // pred_check_branch
          %439 = sbr.rel (%p437) target = $region52
        $region51: #{tpu_custom_call.1} parent=11 // pred_region
          _
        $region52: #{tpu_custom_call.1} parent=11 // pred_fallthru
          _
        // Predicated region
        $region53: #{tpu_custom_call.1} parent=11 // pred_check
          %p440 = pneg %p312
        $region54: #{tpu_custom_call.1} parent=11 // pred_check_branch
          %442 = sbr.rel (%p440) target = $region56
        $region55: #{tpu_custom_call.1} parent=11 // pred_region
          _
        $region56: #{tpu_custom_call.1} parent=11 // pred_fallthru
          _
        // Predicated region
        $region57: #{tpu_custom_call.1} parent=11 // pred_check
          %p443 = pneg %p333
        $region58: #{tpu_custom_call.1} parent=11 // pred_check_branch
          %445 = sbr.rel (%p443) target = $region60
        $region59: #{tpu_custom_call.1} parent=11 // pred_region
          _
        $region60: #{tpu_custom_call.1} parent=11 // pred_fallthru
          _
      $region12: #{tpu_custom_call.1} parent=5 // pred_fallthru
        _
      %p446 = scmp.lt.s32.totalorder %s29, 2
      // Predicated region
      $region61: #{tpu_custom_call.1} parent=5 // pred_check
        %p447 = pneg %p446
      $region62: #{tpu_custom_call.1} parent=5 // pred_check_branch
        %449 = sbr.rel (%p447) target = $region64
      $region63: #{tpu_custom_call.1} parent=5 // pred_region
        // Predicated region
        $region65: #{tpu_custom_call.1} parent=63 // pred_check
          %p450 = pneg %p49
        $region66: #{tpu_custom_call.1} parent=63 // pred_check_branch
          %452 = sbr.rel (%p450) target = $region68
        $region67: #{tpu_custom_call.1} parent=63 // pred_region
          %p453 = scmp.lt.s32.totalorder %s29, 1
          %s454 = scalar_select %p453, %s29, 1
          %s455 = smul.addr %s454, 8
          %s456 = scalar_lea.vmem %s0, %s455
        $region68: #{tpu_custom_call.1} parent=63 // pred_fallthru
          _
        // Predicated region
        $region69: #{tpu_custom_call.1} parent=63 // pred_check
          %p457 = pneg %p75
        $region70: #{tpu_custom_call.1} parent=63 // pred_check_branch
          %459 = sbr.rel (%p457) target = $region72
        $region71: #{tpu_custom_call.1} parent=63 // pred_region
          %p460 = scmp.lt.s32.totalorder %s29, 1
          %s461 = scalar_select %p460, %s29, 1
          %s462 = smul.addr %s461, 8
          %s463 = scalar_lea.vmem %s1, %s462
        $region72: #{tpu_custom_call.1} parent=63 // pred_fallthru
          _
      $region64: #{tpu_custom_call.1} parent=5 // pred_fallthru
        _
      %p464 = scmp.le.s32.totalorder 1, %s29
      %p465 = scmp.lt.s32.totalorder %s29, 3
      %p466 = pnand %p464, %p465
      %p467 = pneg %p466
      // Predicated region
      $region73: #{tpu_custom_call.1} parent=5 // pred_check
        _
      $region74: #{tpu_custom_call.1} parent=5 // pred_check_branch
        %469 = sbr.rel (%p466) target = $region76
      $region75: #{tpu_custom_call.1} parent=5 // pred_region
        %s470 = ssub.s32 %s29, 1
        // Predicated region
        $region77: #{tpu_custom_call.1} parent=75 // pred_check
          %p471 = pneg %p144
        $region78: #{tpu_custom_call.1} parent=75 // pred_check_branch
          %473 = sbr.rel (%p471) target = $region80
        $region79: #{tpu_custom_call.1} parent=75 // pred_region
          %474 = dma.done [#allocation3], 256
        $region80: #{tpu_custom_call.1} parent=75 // pred_fallthru
          _
        %p475 = scmp.lt.s32.totalorder %s34, 1
        %s476 = scalar_select %p475, %s34, 1
        %s477 = smul.addr %s476, 8
        %s478 = scalar_lea.vmem %s0, %s477
        %p479 = pneg %p55
        %p480 = pneg %p52
        %p481 = scmp.lt.s32.totalorder %s34, 1
        %s482 = scalar_select %p481, %s34, 1
        %s483 = smul.addr %s482, 8
        %s484 = scalar_lea.vmem %s1, %s483
        %p485 = pneg %p81
        %p486 = pneg %p78
        %p487 = pneg %p102
        %p488 = pneg %p99
        %p489 = pneg %p123
        %p490 = pneg %p120
        %p491 = pneg %p144
        %p492 = pneg %p141
        %p493 = pneg %p165
        %p494 = pneg %p162
        %p495 = pneg %p186
        %p496 = pneg %p183
        %p497 = pneg %p207
        %p498 = pneg %p204
        %p499 = pneg %p228
        %p500 = pneg %p225
        %p501 = pneg %p249
        %p502 = pneg %p246
        %p503 = pneg %p270
        %p504 = pneg %p267
        %p505 = pneg %p291
        %p506 = pneg %p288
        %p507 = pneg %p312
        %p508 = pneg %p309
        %p509 = pneg %p333
        %p510 = pneg %p330
        %p511 = pneg %p359
        %p512 = pneg %p356
        %s513 = sand.u32 %s346, 1
        %s514 = scalar_lea.sflag [#allocation4], %s513
        %s515 = sand.u32 %s346, 1
        %s516 = smul.addr %s515, 8
        %s517 = scalar_lea.vmem [#allocation5], %s516
        %p518 = pneg %p385
        %p519 = pneg %p382
        %s520 = sand.u32 %s372, 1
        %s521 = scalar_lea.sflag [#allocation7], %s520
        %s522 = sand.u32 %s372, 1
        %s523 = smul.addr %s522, 16
        %s524 = scalar_lea.vmem [#allocation6], %s523
        %p525 = scmp.lt.s32.totalorder %s34, 1
        %s526 = scalar_select %p525, %s34, 1
        %s527 = smul.addr %s526, 8
        %s528 = scalar_lea.vmem %s0, %s527
        %p529 = scmp.lt.s32.totalorder %s34, 1
        %s530 = scalar_select %p529, %s34, 1
        %s531 = smul.addr %s530, 8
        %s532 = scalar_lea.vmem %s1, %s531
        %v533 = vld [vmem:[%s528] sm:$0xff]
        %v534 = vld [vmem:[%s532] sm:$0xff]
        %v535 = vld [vmem:[%s2] sm:$0xff]
        %v536 = vld [vmem:[%s2 + $0x8] sm:$0xff]
        %v537 = vld [vmem:[%s2 + $0x10] sm:$0xff]
        %v538 = vld [vmem:[%s2 + $0x18] sm:$0xff]
        %v539 = vld [vmem:[%s3] sm:$0x1]
        %v541 = vlaneseq
        %v542 = vshrl.u32 %v541, 7
        %v543 = vsub.s32 0, %v542
        %v544 = vrot.slane %v539, %v543
        %vm546 = vcmask 261120
        %v548 = vsel %vm546, %v533, 0
        %550 = vmatprep.subr.mxu0 0.0
        %551 = vmatpush1.msra.mxu0 0.0
        %552 = vmatprep.subr.mxu0 0.0
        %553 = vmatpush1.msra.mxu0 0.0
        %554 = vmatprep.subr.mxu0 0.0
        %555 = vmatpush1.msra.mxu0 0.0
        %556 = vmatprep.subr.mxu0 0.0
        %557 = vmatpush1.msra.mxu0 0.0
        %558 = vmatprep.subr.mxu0 0.0
        %559 = vmatpush1.msra.mxu0 0.0
        %560 = vmatprep.subr.mxu0 0.0
        %561 = vmatpush1.msra.mxu0 0.0
        %562 = vmatprep.subr.mxu0 0.0
        %563 = vmatpush1.msra.mxu0 0.0
        %564 = vmatprep.subr.mxu0 0.0
        %565 = vmatpush1.msra.mxu0 0.0
        %566 = vmatprep.subr.mxu0 0.0
        %567 = vmatpush1.msra.mxu0 0.0
        %568 = vmatprep.subr.mxu0 0.0
        %569 = vmatpush1.msra.mxu0 0.0
        %570 = vmatprep.subr.mxu0 0.0
        %571 = vmatpush1.msra.mxu0 0.0
        %572 = vmatprep.subr.mxu0 0.0
        %573 = vmatpush1.msra.mxu0 0.0
        %574 = vmatprep.subr.mxu0 0.0
        %575 = vmatpush1.msra.mxu0 %v538
        %576 = vmatprep.subr.mxu0 0.0
        %577 = vmatpush1.msra.mxu0 %v537
        %578 = vmatprep.subr.mxu0 0.0
        %579 = vmatpush1.msra.mxu0 %v536
        %580 = vmatprep.subr.mxu0 0.0
        %581 = vmatpush1.msra.mxu0 %v535
        %582 = vmatprep.subr.mxu0 0.0
        %583 = vmatpush2.msra.mxu0 0.0
        %584 = vmatprep.subr.mxu0 0.0
        %585 = vmatpush2.msra.mxu0 0.0
        %586 = vmatprep.subr.mxu0 0.0
        %587 = vmatpush2.msra.mxu0 0.0
        %588 = vmatprep.subr.mxu0 0.0
        %589 = vmatpush2.msra.mxu0 0.0
        %590 = vmatprep.subr.mxu0 0.0
        %591 = vmatpush2.msra.mxu0 0.0
        %592 = vmatprep.subr.mxu0 0.0
        %593 = vmatpush2.msra.mxu0 0.0
        %594 = vmatprep.subr.mxu0 0.0
        %595 = vmatpush2.msra.mxu0 0.0
        %596 = vmatprep.subr.mxu0 0.0
        %597 = vmatpush2.msra.mxu0 0.0
        %598 = vmatprep.subr.mxu0 0.0
        %599 = vmatpush2.msra.mxu0 0.0
        %600 = vmatprep.subr.mxu0 0.0
        %601 = vmatpush2.msra.mxu0 0.0
        %602 = vmatprep.subr.mxu0 0.0
        %603 = vmatpush2.msra.mxu0 0.0
        %604 = vmatprep.subr.mxu0 0.0
        %605 = vmatpush2.msra.mxu0 0.0
        %606 = vmatprep.subr.mxu0 0.0
        %607 = vmatpush2.msra.mxu0 0.0
        %608 = vmatprep.subr.mxu0 0.0
        %609 = vmatpush2.msra.mxu0 0.0
        %610 = vmatprep.subr.mxu0 0.0
        %611 = vmatpush2.msra.mxu0 0.0
        %612 = vmatprep.subr.mxu0 0.0
        %613 = vmatpush2.msra.mxu0 0.0
        %614 = vmatprep.mubr.f32.mxu0 0.0
        %615 = vmatmul.mubr.f32.gmra.mxu0 %v548
        %v616 = vpop.f32.mrf.mxu0
        %v617 = vadd.f32 %v544, %v616
        %v618 = vpop.f32.mrf.mxu0
        %619 = vdwg.mxu0
        %621 = vrot.lane.b32.xlu0 %v617, 112
        %v622 = vpop.permute.xlu0 %621
        %vm623 = vcmask 64512
        %v624 = vsel %vm623, %v617, 0
        %v626 = vsel %vm623, %v622, 0
        %628 = vmatprep.subr.mxu0 0.0
        %629 = vmatpush1.xpose.msra.mxu0 0.0
        %630 = vmatprep.subr.mxu0 0.0
        %631 = vmatpush1.xpose.msra.mxu0 0.0
        %632 = vmatprep.subr.mxu0 0.0
        %633 = vmatpush1.xpose.msra.mxu0 0.0
        %634 = vmatprep.subr.mxu0 0.0
        %635 = vmatpush1.xpose.msra.mxu0 0.0
        %636 = vmatprep.subr.mxu0 0.0
        %637 = vmatpush1.xpose.msra.mxu0 0.0
        %638 = vmatprep.subr.mxu0 0.0
        %639 = vmatpush1.xpose.msra.mxu0 0.0
        %640 = vmatprep.subr.mxu0 0.0
        %641 = vmatpush1.xpose.msra.mxu0 0.0
        %642 = vmatprep.subr.mxu0 0.0
        %643 = vmatpush1.xpose.msra.mxu0 0.0
        %644 = vmatprep.subr.mxu0 0.0
        %645 = vmatpush1.xpose.msra.mxu0 0.0
        %646 = vmatprep.subr.mxu0 0.0
        %647 = vmatpush1.xpose.msra.mxu0 0.0
        %648 = vmatprep.subr.mxu0 0.0
        %649 = vmatpush1.xpose.msra.mxu0 0.0
        %650 = vmatprep.subr.mxu0 0.0
        %651 = vmatpush1.xpose.msra.mxu0 0.0
        %652 = vmatprep.subr.mxu0 0.0
        %653 = vmatpush1.xpose.msra.mxu0 0.0
        %654 = vmatprep.subr.mxu0 0.0
        %655 = vmatpush1.xpose.msra.mxu0 0.0
        %656 = vmatprep.subr.mxu0 0.0
        %657 = vmatpush1.xpose.msra.mxu0 0.0
        %658 = vmatprep.subr.mxu0 0.0
        %659 = vmatpush1.xpose.msra.mxu0 %v626
        %660 = vmatprep.subr.mxu0 0.0
        %661 = vmatpush2.xpose.msra.mxu0 0.0
        %662 = vmatprep.subr.mxu0 0.0
        %663 = vmatpush2.xpose.msra.mxu0 0.0
        %664 = vmatprep.subr.mxu0 0.0
        %665 = vmatpush2.xpose.msra.mxu0 0.0
        %666 = vmatprep.subr.mxu0 0.0
        %667 = vmatpush2.xpose.msra.mxu0 0.0
        %668 = vmatprep.subr.mxu0 0.0
        %669 = vmatpush2.xpose.msra.mxu0 0.0
        %670 = vmatprep.subr.mxu0 0.0
        %671 = vmatpush2.xpose.msra.mxu0 0.0
        %672 = vmatprep.subr.mxu0 0.0
        %673 = vmatpush2.xpose.msra.mxu0 0.0
        %674 = vmatprep.subr.mxu0 0.0
        %675 = vmatpush2.xpose.msra.mxu0 0.0
        %676 = vmatprep.subr.mxu0 0.0
        %677 = vmatpush2.xpose.msra.mxu0 0.0
        %678 = vmatprep.subr.mxu0 0.0
        %679 = vmatpush2.xpose.msra.mxu0 0.0
        %680 = vmatprep.subr.mxu0 0.0
        %681 = vmatpush2.xpose.msra.mxu0 0.0
        %682 = vmatprep.subr.mxu0 0.0
        %683 = vmatpush2.xpose.msra.mxu0 0.0
        %684 = vmatprep.subr.mxu0 0.0
        %685 = vmatpush2.xpose.msra.mxu0 0.0
        %686 = vmatprep.subr.mxu0 0.0
        %687 = vmatpush2.xpose.msra.mxu0 0.0
        %688 = vmatprep.subr.mxu0 0.0
        %689 = vmatpush2.xpose.msra.mxu0 0.0
        %690 = vmatprep.subr.mxu0 0.0
        %691 = vmatpush2.xpose.msra.mxu0 0.0
        %692 = vmatprep.mubr.f32.mxu0 0.0
        %693 = vmatmul.mubr.f32.gmra.mxu0 %v624
        %v694 = vpop.f32.mrf.mxu0
        %v695 = vadd.f32 0.0, %v694
        %v696 = vpop.f32.mrf.mxu0
        %697 = vdwg.mxu0
        %v698 = vmul.f32 %v695, 0.35355338
        %vm699 = vcmp.gt.f32.partialorder %v534, 0.0
        %v700 = vsel %vm699, -1e+09, %v698
        %v701 = vsel %vm623, %v700, -inf
        %702 = vmax.xlane.f32.xlu0 %v701
        %v703 = vpop.xlane.xlu0 %702
        %v704 = vsub.f32 %v700, %v703
        %v705 = vmul.f32 %v704, 1.442695
        %v706 = vpow.pop %v705
        %v707 = vsel %vm623, %v706, 0.0
        %708 = vadd.xlane.f32.xlu0 %v707
        %v709 = vpop.xlane.xlu0 %708
        %v710 = vrcp.pop %v709
        %v711 = vmul.f32 %v706, %v710
        %712 = vst.msk [vmem:[%s524] sm:$0xff] %vm623, %v711
        %713 = vrot.lane.b32.xlu0 %v617, 96
        %v714 = vpop.permute.xlu0 %713
        %v717 = vsel %vm623, %v711, 0
        %719 = vmatprep.subr.mxu0 0.0
        %720 = vmatpush1.msra.mxu0 0.0
        %721 = vmatprep.subr.mxu0 0.0
        %722 = vmatpush1.msra.mxu0 0.0
        %723 = vmatprep.subr.mxu0 0.0
        %724 = vmatpush1.msra.mxu0 0.0
        %725 = vmatprep.subr.mxu0 0.0
        %726 = vmatpush1.msra.mxu0 0.0
        %727 = vmatprep.subr.mxu0 0.0
        %728 = vmatpush1.msra.mxu0 0.0
        %729 = vmatprep.subr.mxu0 0.0
        %730 = vmatpush1.msra.mxu0 0.0
        %731 = vmatprep.subr.mxu0 0.0
        %732 = vmatpush1.msra.mxu0 0.0
        %733 = vmatprep.subr.mxu0 0.0
        %734 = vmatpush1.msra.mxu0 0.0
        %735 = vmatprep.subr.mxu0 0.0
        %736 = vmatpush1.msra.mxu0 0.0
        %737 = vmatprep.subr.mxu0 0.0
        %738 = vmatpush1.msra.mxu0 0.0
        %739 = vmatprep.subr.mxu0 0.0
        %740 = vmatpush1.msra.mxu0 0.0
        %741 = vmatprep.subr.mxu0 0.0
        %742 = vmatpush1.msra.mxu0 0.0
        %743 = vmatprep.subr.mxu0 0.0
        %744 = vmatpush1.msra.mxu0 0.0
        %745 = vmatprep.subr.mxu0 0.0
        %746 = vmatpush1.msra.mxu0 0.0
        %747 = vmatprep.subr.mxu0 0.0
        %748 = vmatpush1.msra.mxu0 0.0
        %749 = vmatprep.subr.mxu0 0.0
        %750 = vmatpush1.msra.mxu0 %v714
        %751 = vmatprep.subr.mxu0 0.0
        %752 = vmatpush2.msra.mxu0 0.0
        %753 = vmatprep.subr.mxu0 0.0
        %754 = vmatpush2.msra.mxu0 0.0
        %755 = vmatprep.subr.mxu0 0.0
        %756 = vmatpush2.msra.mxu0 0.0
        %757 = vmatprep.subr.mxu0 0.0
        %758 = vmatpush2.msra.mxu0 0.0
        %759 = vmatprep.subr.mxu0 0.0
        %760 = vmatpush2.msra.mxu0 0.0
        %761 = vmatprep.subr.mxu0 0.0
        %762 = vmatpush2.msra.mxu0 0.0
        %763 = vmatprep.subr.mxu0 0.0
        %764 = vmatpush2.msra.mxu0 0.0
        %765 = vmatprep.subr.mxu0 0.0
        %766 = vmatpush2.msra.mxu0 0.0
        %767 = vmatprep.subr.mxu0 0.0
        %768 = vmatpush2.msra.mxu0 0.0
        %769 = vmatprep.subr.mxu0 0.0
        %770 = vmatpush2.msra.mxu0 0.0
        %771 = vmatprep.subr.mxu0 0.0
        %772 = vmatpush2.msra.mxu0 0.0
        %773 = vmatprep.subr.mxu0 0.0
        %774 = vmatpush2.msra.mxu0 0.0
        %775 = vmatprep.subr.mxu0 0.0
        %776 = vmatpush2.msra.mxu0 0.0
        %777 = vmatprep.subr.mxu0 0.0
        %778 = vmatpush2.msra.mxu0 0.0
        %779 = vmatprep.subr.mxu0 0.0
        %780 = vmatpush2.msra.mxu0 0.0
        %781 = vmatprep.subr.mxu0 0.0
        %782 = vmatpush2.msra.mxu0 0.0
        %783 = vmatprep.mubr.f32.mxu0 0.0
        %784 = vmatmul.mubr.f32.gmra.mxu0 %v717
        %v785 = vpop.f32.mrf.mxu0
        %v786 = vadd.f32 0.0, %v785
        %v787 = vpop.f32.mrf.mxu0
        %788 = vdwg.mxu0
        %v789 = vld [vmem:[#allocation2] sm:$0xff]
        %790 = vrot.lane.b32.xlu0 %v617, 120
        %v791 = vpop.permute.xlu0 %790
        %792 = vrot.lane.b32.xlu0 %v617, 104
        %v793 = vpop.permute.xlu0 %792
        %v794 = vsel %vm623, %v791, 0
        %v796 = vsel %vm623, %v793, 0
        %798 = vmatprep.subr.mxu0 0.0
        %799 = vmatpush1.xpose.msra.mxu0 0.0
        %800 = vmatprep.subr.mxu0 0.0
        %801 = vmatpush1.xpose.msra.mxu0 0.0
        %802 = vmatprep.subr.mxu0 0.0
        %803 = vmatpush1.xpose.msra.mxu0 0.0
        %804 = vmatprep.subr.mxu0 0.0
        %805 = vmatpush1.xpose.msra.mxu0 0.0
        %806 = vmatprep.subr.mxu0 0.0
        %807 = vmatpush1.xpose.msra.mxu0 0.0
        %808 = vmatprep.subr.mxu0 0.0
        %809 = vmatpush1.xpose.msra.mxu0 0.0
        %810 = vmatprep.subr.mxu0 0.0
        %811 = vmatpush1.xpose.msra.mxu0 0.0
        %812 = vmatprep.subr.mxu0 0.0
        %813 = vmatpush1.xpose.msra.mxu0 0.0
        %814 = vmatprep.subr.mxu0 0.0
        %815 = vmatpush1.xpose.msra.mxu0 0.0
        %816 = vmatprep.subr.mxu0 0.0
        %817 = vmatpush1.xpose.msra.mxu0 0.0
        %818 = vmatprep.subr.mxu0 0.0
        %819 = vmatpush1.xpose.msra.mxu0 0.0
        %820 = vmatprep.subr.mxu0 0.0
        %821 = vmatpush1.xpose.msra.mxu0 0.0
        %822 = vmatprep.subr.mxu0 0.0
        %823 = vmatpush1.xpose.msra.mxu0 0.0
        %824 = vmatprep.subr.mxu0 0.0
        %825 = vmatpush1.xpose.msra.mxu0 0.0
        %826 = vmatprep.subr.mxu0 0.0
        %827 = vmatpush1.xpose.msra.mxu0 0.0
        %828 = vmatprep.subr.mxu0 0.0
        %829 = vmatpush1.xpose.msra.mxu0 %v796
        %830 = vmatprep.subr.mxu0 0.0
        %831 = vmatpush2.xpose.msra.mxu0 0.0
        %832 = vmatprep.subr.mxu0 0.0
        %833 = vmatpush2.xpose.msra.mxu0 0.0
        %834 = vmatprep.subr.mxu0 0.0
        %835 = vmatpush2.xpose.msra.mxu0 0.0
        %836 = vmatprep.subr.mxu0 0.0
        %837 = vmatpush2.xpose.msra.mxu0 0.0
        %838 = vmatprep.subr.mxu0 0.0
        %839 = vmatpush2.xpose.msra.mxu0 0.0
        %840 = vmatprep.subr.mxu0 0.0
        %841 = vmatpush2.xpose.msra.mxu0 0.0
        %842 = vmatprep.subr.mxu0 0.0
        %843 = vmatpush2.xpose.msra.mxu0 0.0
        %844 = vmatprep.subr.mxu0 0.0
        %845 = vmatpush2.xpose.msra.mxu0 0.0
        %846 = vmatprep.subr.mxu0 0.0
        %847 = vmatpush2.xpose.msra.mxu0 0.0
        %848 = vmatprep.subr.mxu0 0.0
        %849 = vmatpush2.xpose.msra.mxu0 0.0
        %850 = vmatprep.subr.mxu0 0.0
        %851 = vmatpush2.xpose.msra.mxu0 0.0
        %852 = vmatprep.subr.mxu0 0.0
        %853 = vmatpush2.xpose.msra.mxu0 0.0
        %854 = vmatprep.subr.mxu0 0.0
        %855 = vmatpush2.xpose.msra.mxu0 0.0
        %856 = vmatprep.subr.mxu0 0.0
        %857 = vmatpush2.xpose.msra.mxu0 0.0
        %858 = vmatprep.subr.mxu0 0.0
        %859 = vmatpush2.xpose.msra.mxu0 0.0
        %860 = vmatprep.subr.mxu0 0.0
        %861 = vmatpush2.xpose.msra.mxu0 0.0
        %862 = vmatprep.mubr.f32.mxu0 0.0
        %863 = vmatmul.mubr.f32.gmra.mxu0 %v794
        %v864 = vpop.f32.mrf.mxu0
        %v865 = vadd.f32 0.0, %v864
        %v866 = vpop.f32.mrf.mxu0
        %867 = vdwg.mxu0
        %v868 = vmul.f32 %v865, 0.35355338
        %v869 = vsel %vm699, -1e+09, %v868
        %v870 = vsel %vm623, %v869, -inf
        %871 = vmax.xlane.f32.xlu0 %v870
        %v872 = vpop.xlane.xlu0 %871
        %v873 = vsub.f32 %v869, %v872
        %v874 = vmul.f32 %v873, 1.442695
        %v875 = vpow.pop %v874
        %v876 = vsel %vm623, %v875, 0.0
        %877 = vadd.xlane.f32.xlu0 %v876
        %v878 = vpop.xlane.xlu0 %877
        %v879 = vrcp.pop %v878
        %v880 = vmul.f32 %v875, %v879
        %s881 = scalar_lea.vmem %s524, 8 [#allocation6]
        %882 = vst.msk [vmem:[%s881] sm:$0xff] %vm623, %v880
        %883 = vrot.lane.b32.xlu0 %v617, 88
        %v884 = vpop.permute.xlu0 %883
        %v887 = vsel %vm623, %v880, 0
        %889 = vmatprep.subr.mxu0 0.0
        %890 = vmatpush1.msra.mxu0 0.0
        %891 = vmatprep.subr.mxu0 0.0
        %892 = vmatpush1.msra.mxu0 0.0
        %893 = vmatprep.subr.mxu0 0.0
        %894 = vmatpush1.msra.mxu0 0.0
        %895 = vmatprep.subr.mxu0 0.0
        %896 = vmatpush1.msra.mxu0 0.0
        %897 = vmatprep.subr.mxu0 0.0
        %898 = vmatpush1.msra.mxu0 0.0
        %899 = vmatprep.subr.mxu0 0.0
        %900 = vmatpush1.msra.mxu0 0.0
        %901 = vmatprep.subr.mxu0 0.0
        %902 = vmatpush1.msra.mxu0 0.0
        %903 = vmatprep.subr.mxu0 0.0
        %904 = vmatpush1.msra.mxu0 0.0
        %905 = vmatprep.subr.mxu0 0.0
        %906 = vmatpush1.msra.mxu0 0.0
        %907 = vmatprep.subr.mxu0 0.0
        %908 = vmatpush1.msra.mxu0 0.0
        %909 = vmatprep.subr.mxu0 0.0
        %910 = vmatpush1.msra.mxu0 0.0
        %911 = vmatprep.subr.mxu0 0.0
        %912 = vmatpush1.msra.mxu0 0.0
        %913 = vmatprep.subr.mxu0 0.0
        %914 = vmatpush1.msra.mxu0 0.0
        %915 = vmatprep.subr.mxu0 0.0
        %916 = vmatpush1.msra.mxu0 0.0
        %917 = vmatprep.subr.mxu0 0.0
        %918 = vmatpush1.msra.mxu0 0.0
        %919 = vmatprep.subr.mxu0 0.0
        %920 = vmatpush1.msra.mxu0 %v884
        %921 = vmatprep.subr.mxu0 0.0
        %922 = vmatpush2.msra.mxu0 0.0
        %923 = vmatprep.subr.mxu0 0.0
        %924 = vmatpush2.msra.mxu0 0.0
        %925 = vmatprep.subr.mxu0 0.0
        %926 = vmatpush2.msra.mxu0 0.0
        %927 = vmatprep.subr.mxu0 0.0
        %928 = vmatpush2.msra.mxu0 0.0
        %929 = vmatprep.subr.mxu0 0.0
        %930 = vmatpush2.msra.mxu0 0.0
        %931 = vmatprep.subr.mxu0 0.0
        %932 = vmatpush2.msra.mxu0 0.0
        %933 = vmatprep.subr.mxu0 0.0
        %934 = vmatpush2.msra.mxu0 0.0
        %935 = vmatprep.subr.mxu0 0.0
        %936 = vmatpush2.msra.mxu0 0.0
        %937 = vmatprep.subr.mxu0 0.0
        %938 = vmatpush2.msra.mxu0 0.0
        %939 = vmatprep.subr.mxu0 0.0
        %940 = vmatpush2.msra.mxu0 0.0
        %941 = vmatprep.subr.mxu0 0.0
        %942 = vmatpush2.msra.mxu0 0.0
        %943 = vmatprep.subr.mxu0 0.0
        %944 = vmatpush2.msra.mxu0 0.0
        %945 = vmatprep.subr.mxu0 0.0
        %946 = vmatpush2.msra.mxu0 0.0
        %947 = vmatprep.subr.mxu0 0.0
        %948 = vmatpush2.msra.mxu0 0.0
        %949 = vmatprep.subr.mxu0 0.0
        %950 = vmatpush2.msra.mxu0 0.0
        %951 = vmatprep.subr.mxu0 0.0
        %952 = vmatpush2.msra.mxu0 0.0
        %953 = vmatprep.mubr.f32.mxu0 0.0
        %954 = vmatmul.mubr.f32.gmra.mxu0 %v887
        %v955 = vpop.f32.mrf.mxu0
        %v956 = vadd.f32 0.0, %v955
        %v957 = vpop.f32.mrf.mxu0
        %958 = vdwg.mxu0
        %v959 = vld [vmem:[#allocation2 + $0x8] sm:$0xff]
        %v961 = vsel %vm623, %v956, 0
        %963 = vmatprep.subr.mxu0 0.0
        %964 = vmatpush1.msra.mxu0 0.0
        %965 = vmatprep.subr.mxu0 0.0
        %966 = vmatpush1.msra.mxu0 0.0
        %967 = vmatprep.subr.mxu0 0.0
        %968 = vmatpush1.msra.mxu0 0.0
        %969 = vmatprep.subr.mxu0 0.0
        %970 = vmatpush1.msra.mxu0 0.0
        %971 = vmatprep.subr.mxu0 0.0
        %972 = vmatpush1.msra.mxu0 0.0
        %973 = vmatprep.subr.mxu0 0.0
        %974 = vmatpush1.msra.mxu0 0.0
        %975 = vmatprep.subr.mxu0 0.0
        %976 = vmatpush1.msra.mxu0 0.0
        %977 = vmatprep.subr.mxu0 0.0
        %978 = vmatpush1.msra.mxu0 0.0
        %979 = vmatprep.subr.mxu0 0.0
        %980 = vmatpush1.msra.mxu0 0.0
        %981 = vmatprep.subr.mxu0 0.0
        %982 = vmatpush1.msra.mxu0 0.0
        %983 = vmatprep.subr.mxu0 0.0
        %984 = vmatpush1.msra.mxu0 0.0
        %985 = vmatprep.subr.mxu0 0.0
        %986 = vmatpush1.msra.mxu0 0.0
        %987 = vmatprep.subr.mxu0 0.0
        %988 = vmatpush1.msra.mxu0 0.0
        %989 = vmatprep.subr.mxu0 0.0
        %990 = vmatpush1.msra.mxu0 0.0
        %991 = vmatprep.subr.mxu0 0.0
        %992 = vmatpush1.msra.mxu0 0.0
        %993 = vmatprep.subr.mxu0 0.0
        %994 = vmatpush1.msra.mxu0 %v959
        %995 = vmatprep.subr.mxu0 0.0
        %996 = vmatpush2.msra.mxu0 0.0
        %997 = vmatprep.subr.mxu0 0.0
        %998 = vmatpush2.msra.mxu0 0.0
        %999 = vmatprep.subr.mxu0 0.0
        %1000 = vmatpush2.msra.mxu0 0.0
        %1001 = vmatprep.subr.mxu0 0.0
        %1002 = vmatpush2.msra.mxu0 0.0
        %1003 = vmatprep.subr.mxu0 0.0
        %1004 = vmatpush2.msra.mxu0 0.0
        %1005 = vmatprep.subr.mxu0 0.0
        %1006 = vmatpush2.msra.mxu0 0.0
        %1007 = vmatprep.subr.mxu0 0.0
        %1008 = vmatpush2.msra.mxu0 0.0
        %1009 = vmatprep.subr.mxu0 0.0
        %1010 = vmatpush2.msra.mxu0 0.0
        %1011 = vmatprep.subr.mxu0 0.0
        %1012 = vmatpush2.msra.mxu0 0.0
        %1013 = vmatprep.subr.mxu0 0.0
        %1014 = vmatpush2.msra.mxu0 0.0
        %1015 = vmatprep.subr.mxu0 0.0
        %1016 = vmatpush2.msra.mxu0 0.0
        %1017 = vmatprep.subr.mxu0 0.0
        %1018 = vmatpush2.msra.mxu0 0.0
        %1019 = vmatprep.subr.mxu0 0.0
        %1020 = vmatpush2.msra.mxu0 0.0
        %1021 = vmatprep.subr.mxu0 0.0
        %1022 = vmatpush2.msra.mxu0 0.0
        %1023 = vmatprep.subr.mxu0 0.0
        %1024 = vmatpush2.msra.mxu0 0.0
        %1025 = vmatprep.subr.mxu0 0.0
        %1026 = vmatpush2.msra.mxu0 0.0
        %1027 = vmatprep.mubr.f32.mxu0 0.0
        %1028 = vmatmul.mubr.f32.gmra.mxu0 %v961
        %v1029 = vpop.f32.mrf.mxu0
        %v1030 = vadd.f32 0.0, %v1029
        %v1031 = vpop.f32.mrf.mxu0
        %1032 = vdwg.mxu0
        %v1034 = vsel %vm623, %v786, 0
        %1036 = vmatprep.subr.mxu0 0.0
        %1037 = vmatpush1.msra.mxu0 0.0
        %1038 = vmatprep.subr.mxu0 0.0
        %1039 = vmatpush1.msra.mxu0 0.0
        %1040 = vmatprep.subr.mxu0 0.0
        %1041 = vmatpush1.msra.mxu0 0.0
        %1042 = vmatprep.subr.mxu0 0.0
        %1043 = vmatpush1.msra.mxu0 0.0
        %1044 = vmatprep.subr.mxu0 0.0
        %1045 = vmatpush1.msra.mxu0 0.0
        %1046 = vmatprep.subr.mxu0 0.0
        %1047 = vmatpush1.msra.mxu0 0.0
        %1048 = vmatprep.subr.mxu0 0.0
        %1049 = vmatpush1.msra.mxu0 0.0
        %1050 = vmatprep.subr.mxu0 0.0
        %1051 = vmatpush1.msra.mxu0 0.0
        %1052 = vmatprep.subr.mxu0 0.0
        %1053 = vmatpush1.msra.mxu0 0.0
        %1054 = vmatprep.subr.mxu0 0.0
        %1055 = vmatpush1.msra.mxu0 0.0
        %1056 = vmatprep.subr.mxu0 0.0
        %1057 = vmatpush1.msra.mxu0 0.0
        %1058 = vmatprep.subr.mxu0 0.0
        %1059 = vmatpush1.msra.mxu0 0.0
        %1060 = vmatprep.subr.mxu0 0.0
        %1061 = vmatpush1.msra.mxu0 0.0
        %1062 = vmatprep.subr.mxu0 0.0
        %1063 = vmatpush1.msra.mxu0 0.0
        %1064 = vmatprep.subr.mxu0 0.0
        %1065 = vmatpush1.msra.mxu0 0.0
        %1066 = vmatprep.subr.mxu0 0.0
        %1067 = vmatpush1.msra.mxu0 %v789
        %1068 = vmatprep.subr.mxu0 0.0
        %1069 = vmatpush2.msra.mxu0 0.0
        %1070 = vmatprep.subr.mxu0 0.0
        %1071 = vmatpush2.msra.mxu0 0.0
        %1072 = vmatprep.subr.mxu0 0.0
        %1073 = vmatpush2.msra.mxu0 0.0
        %1074 = vmatprep.subr.mxu0 0.0
        %1075 = vmatpush2.msra.mxu0 0.0
        %1076 = vmatprep.subr.mxu0 0.0
        %1077 = vmatpush2.msra.mxu0 0.0
        %1078 = vmatprep.subr.mxu0 0.0
        %1079 = vmatpush2.msra.mxu0 0.0
        %1080 = vmatprep.subr.mxu0 0.0
        %1081 = vmatpush2.msra.mxu0 0.0
        %1082 = vmatprep.subr.mxu0 0.0
        %1083 = vmatpush2.msra.mxu0 0.0
        %1084 = vmatprep.subr.mxu0 0.0
        %1085 = vmatpush2.msra.mxu0 0.0
        %1086 = vmatprep.subr.mxu0 0.0
        %1087 = vmatpush2.msra.mxu0 0.0
        %1088 = vmatprep.subr.mxu0 0.0
        %1089 = vmatpush2.msra.mxu0 0.0
        %1090 = vmatprep.subr.mxu0 0.0
        %1091 = vmatpush2.msra.mxu0 0.0
        %1092 = vmatprep.subr.mxu0 0.0
        %1093 = vmatpush2.msra.mxu0 0.0
        %1094 = vmatprep.subr.mxu0 0.0
        %1095 = vmatpush2.msra.mxu0 0.0
        %1096 = vmatprep.subr.mxu0 0.0
        %1097 = vmatpush2.msra.mxu0 0.0
        %1098 = vmatprep.subr.mxu0 0.0
        %1099 = vmatpush2.msra.mxu0 0.0
        %1100 = vmatprep.mubr.f32.mxu0 0.0
        %1101 = vmatmul.mubr.f32.gmra.mxu0 %v1034
        %v1102 = vpop.f32.mrf.mxu0
        %v1103 = vadd.f32 %v1030, %v1102
        %v1104 = vpop.f32.mrf.mxu0
        %1105 = vdwg.mxu0
        %v1106 = vld [vmem:[%s5] sm:$0x1]
        %v1108 = vlaneseq
        %v1109 = vshrl.u32 %v1108, 7
        %v1110 = vsub.s32 0, %v1109
        %v1111 = vrot.slane %v1106, %v1110
        %v1113 = vadd.f32 %v1103, %v1111
        %v1114 = vadd.f32 %v1113, %v533
        %v1115 = vld [vmem:[%s6] sm:$0x1]
        %v1116 = vld [vmem:[%s7] sm:$0x1]
        %v1117 = vsel %vm546, %v1114, 0.0
        %1118 = vadd.xlane.f32.xlu0 %v1117
        %v1119 = vpop.xlane.xlu0 %1118
        %v1120 = vrcp.pop 32.0
        %v1121 = vmul.f32 %v1119, %v1120
        %v1122 = vsub.f32 %v1114, %v1121
        %v1123 = vmul.f32 %v1122, %v1122
        %v1124 = vsel %vm546, %v1123, 0.0
        %1125 = vadd.xlane.f32.xlu0 %v1124
        %v1126 = vpop.xlane.xlu0 %1125
        %v1127 = vmul.f32 %v1126, %v1120
        %v1128 = vadd.f32 %v1127, 1e-05
        %v1129 = vrsqrt.pop %v1128
        %v1130 = vmul.f32 %v1122, %v1129
        %v1132 = vlaneseq
        %v1133 = vshrl.u32 %v1132, 7
        %v1134 = vsub.s32 0, %v1133
        %v1135 = vrot.slane %v1115, %v1134
        %v1137 = vmul.f32 %v1130, %v1135
        %v1139 = vlaneseq
        %v1140 = vshrl.u32 %v1139, 7
        %v1141 = vsub.s32 0, %v1140
        %v1142 = vrot.slane %v1116, %v1141
        %v1144 = vadd.f32 %v1137, %v1142
        %v1145 = vld [vmem:[%s8] sm:$0xff]
        %v1146 = vld [vmem:[%s8 + $0x8] sm:$0xff]
        %v1147 = vld [vmem:[%s8 + $0x10] sm:$0xff]
        %v1148 = vld [vmem:[%s8 + $0x18] sm:$0xff]
        %v1149 = vld [vmem:[%s9] sm:$0x1]
        %v1151 = vlaneseq
        %v1152 = vshrl.u32 %v1151, 7
        %v1153 = vsub.s32 0, %v1152
        %v1154 = vrot.slane %v1149, %v1153
        %v1157 = vsel %vm546, %v1144, 0
        %1159 = vmatprep.subr.mxu0 0.0
        %1160 = vmatpush1.msra.mxu0 0.0
        %1161 = vmatprep.subr.mxu0 0.0
        %1162 = vmatpush1.msra.mxu0 0.0
        %1163 = vmatprep.subr.mxu0 0.0
        %1164 = vmatpush1.msra.mxu0 0.0
        %1165 = vmatprep.subr.mxu0 0.0
        %1166 = vmatpush1.msra.mxu0 0.0
        %1167 = vmatprep.subr.mxu0 0.0
        %1168 = vmatpush1.msra.mxu0 0.0
        %1169 = vmatprep.subr.mxu0 0.0
        %1170 = vmatpush1.msra.mxu0 0.0
        %1171 = vmatprep.subr.mxu0 0.0
        %1172 = vmatpush1.msra.mxu0 0.0
        %1173 = vmatprep.subr.mxu0 0.0
        %1174 = vmatpush1.msra.mxu0 0.0
        %1175 = vmatprep.subr.mxu0 0.0
        %1176 = vmatpush1.msra.mxu0 0.0
        %1177 = vmatprep.subr.mxu0 0.0
        %1178 = vmatpush1.msra.mxu0 0.0
        %1179 = vmatprep.subr.mxu0 0.0
        %1180 = vmatpush1.msra.mxu0 0.0
        %1181 = vmatprep.subr.mxu0 0.0
        %1182 = vmatpush1.msra.mxu0 0.0
        %1183 = vmatprep.subr.mxu0 0.0
        %1184 = vmatpush1.msra.mxu0 %v1148
        %1185 = vmatprep.subr.mxu0 0.0
        %1186 = vmatpush1.msra.mxu0 %v1147
        %1187 = vmatprep.subr.mxu0 0.0
        %1188 = vmatpush1.msra.mxu0 %v1146
        %1189 = vmatprep.subr.mxu0 0.0
        %1190 = vmatpush1.msra.mxu0 %v1145
        %1191 = vmatprep.subr.mxu0 0.0
        %1192 = vmatpush2.msra.mxu0 0.0
        %1193 = vmatprep.subr.mxu0 0.0
        %1194 = vmatpush2.msra.mxu0 0.0
        %1195 = vmatprep.subr.mxu0 0.0
        %1196 = vmatpush2.msra.mxu0 0.0
        %1197 = vmatprep.subr.mxu0 0.0
        %1198 = vmatpush2.msra.mxu0 0.0
        %1199 = vmatprep.subr.mxu0 0.0
        %1200 = vmatpush2.msra.mxu0 0.0
        %1201 = vmatprep.subr.mxu0 0.0
        %1202 = vmatpush2.msra.mxu0 0.0
        %1203 = vmatprep.subr.mxu0 0.0
        %1204 = vmatpush2.msra.mxu0 0.0
        %1205 = vmatprep.subr.mxu0 0.0
        %1206 = vmatpush2.msra.mxu0 0.0
        %1207 = vmatprep.subr.mxu0 0.0
        %1208 = vmatpush2.msra.mxu0 0.0
        %1209 = vmatprep.subr.mxu0 0.0
        %1210 = vmatpush2.msra.mxu0 0.0
        %1211 = vmatprep.subr.mxu0 0.0
        %1212 = vmatpush2.msra.mxu0 0.0
        %1213 = vmatprep.subr.mxu0 0.0
        %1214 = vmatpush2.msra.mxu0 0.0
        %1215 = vmatprep.subr.mxu0 0.0
        %1216 = vmatpush2.msra.mxu0 0.0
        %1217 = vmatprep.subr.mxu0 0.0
        %1218 = vmatpush2.msra.mxu0 0.0
        %1219 = vmatprep.subr.mxu0 0.0
        %1220 = vmatpush2.msra.mxu0 0.0
        %1221 = vmatprep.subr.mxu0 0.0
        %1222 = vmatpush2.msra.mxu0 0.0
        %1223 = vmatprep.mubr.f32.mxu0 0.0
        %1224 = vmatmul.mubr.f32.gmra.mxu0 %v1157
        %v1225 = vpop.f32.mrf.mxu0
        %v1226 = vadd.f32 %v1154, %v1225
        %v1227 = vpop.f32.mrf.mxu0
        %1228 = vdwg.mxu0
        %v1229 = vmax.f32 %v1226, 0.0
        %v1230 = vld [vmem:[%s10] sm:$0xff]
        %v1231 = vld [vmem:[%s10 + $0x8] sm:$0xff]
        %v1232 = vld [vmem:[%s10 + $0x10] sm:$0xff]
        %v1233 = vld [vmem:[%s10 + $0x18] sm:$0xff]
        %v1234 = vld [vmem:[%s10 + $0x20] sm:$0xff]
        %v1235 = vld [vmem:[%s10 + $0x28] sm:$0xff]
        %v1236 = vld [vmem:[%s10 + $0x30] sm:$0xff]
        %v1237 = vld [vmem:[%s10 + $0x38] sm:$0xff]
        %v1238 = vld [vmem:[%s11] sm:$0x1]
        %v1240 = vlaneseq
        %v1241 = vshrl.u32 %v1240, 7
        %v1242 = vsub.s32 0, %v1241
        %v1243 = vrot.slane %v1238, %v1242
        %vm1245 = vcmask 523264
        %v1247 = vsel %vm1245, %v1229, 0
        %1249 = vmatprep.subr.mxu0 0.0
        %1250 = vmatpush1.msra.mxu0 0.0
        %1251 = vmatprep.subr.mxu0 0.0
        %1252 = vmatpush1.msra.mxu0 0.0
        %1253 = vmatprep.subr.mxu0 0.0
        %1254 = vmatpush1.msra.mxu0 0.0
        %1255 = vmatprep.subr.mxu0 0.0
        %1256 = vmatpush1.msra.mxu0 0.0
        %1257 = vmatprep.subr.mxu0 0.0
        %1258 = vmatpush1.msra.mxu0 0.0
        %1259 = vmatprep.subr.mxu0 0.0
        %1260 = vmatpush1.msra.mxu0 0.0
        %1261 = vmatprep.subr.mxu0 0.0
        %1262 = vmatpush1.msra.mxu0 0.0
        %1263 = vmatprep.subr.mxu0 0.0
        %1264 = vmatpush1.msra.mxu0 0.0
        %1265 = vmatprep.subr.mxu0 0.0
        %1266 = vmatpush1.msra.mxu0 %v1237
        %1267 = vmatprep.subr.mxu0 0.0
        %1268 = vmatpush1.msra.mxu0 %v1236
        %1269 = vmatprep.subr.mxu0 0.0
        %1270 = vmatpush1.msra.mxu0 %v1235
        %1271 = vmatprep.subr.mxu0 0.0
        %1272 = vmatpush1.msra.mxu0 %v1234
        %1273 = vmatprep.subr.mxu0 0.0
        %1274 = vmatpush1.msra.mxu0 %v1233
        %1275 = vmatprep.subr.mxu0 0.0
        %1276 = vmatpush1.msra.mxu0 %v1232
        %1277 = vmatprep.subr.mxu0 0.0
        %1278 = vmatpush1.msra.mxu0 %v1231
        %1279 = vmatprep.subr.mxu0 0.0
        %1280 = vmatpush1.msra.mxu0 %v1230
        %1281 = vmatprep.subr.mxu0 0.0
        %1282 = vmatpush2.msra.mxu0 0.0
        %1283 = vmatprep.subr.mxu0 0.0
        %1284 = vmatpush2.msra.mxu0 0.0
        %1285 = vmatprep.subr.mxu0 0.0
        %1286 = vmatpush2.msra.mxu0 0.0
        %1287 = vmatprep.subr.mxu0 0.0
        %1288 = vmatpush2.msra.mxu0 0.0
        %1289 = vmatprep.subr.mxu0 0.0
        %1290 = vmatpush2.msra.mxu0 0.0
        %1291 = vmatprep.subr.mxu0 0.0
        %1292 = vmatpush2.msra.mxu0 0.0
        %1293 = vmatprep.subr.mxu0 0.0
        %1294 = vmatpush2.msra.mxu0 0.0
        %1295 = vmatprep.subr.mxu0 0.0
        %1296 = vmatpush2.msra.mxu0 0.0
        %1297 = vmatprep.subr.mxu0 0.0
        %1298 = vmatpush2.msra.mxu0 0.0
        %1299 = vmatprep.subr.mxu0 0.0
        %1300 = vmatpush2.msra.mxu0 0.0
        %1301 = vmatprep.subr.mxu0 0.0
        %1302 = vmatpush2.msra.mxu0 0.0
        %1303 = vmatprep.subr.mxu0 0.0
        %1304 = vmatpush2.msra.mxu0 0.0
        %1305 = vmatprep.subr.mxu0 0.0
        %1306 = vmatpush2.msra.mxu0 0.0
        %1307 = vmatprep.subr.mxu0 0.0
        %1308 = vmatpush2.msra.mxu0 0.0
        %1309 = vmatprep.subr.mxu0 0.0
        %1310 = vmatpush2.msra.mxu0 0.0
        %1311 = vmatprep.subr.mxu0 0.0
        %1312 = vmatpush2.msra.mxu0 0.0
        %1313 = vmatprep.mubr.f32.mxu0 0.0
        %1314 = vmatmul.mubr.f32.gmra.mxu0 %v1247
        %v1315 = vpop.f32.mrf.mxu0
        %v1316 = vadd.f32 %v1243, %v1315
        %v1317 = vpop.f32.mrf.mxu0
        %1318 = vdwg.mxu0
        %v1319 = vadd.f32 %v1316, %v1144
        %v1320 = vld [vmem:[%s12] sm:$0x1]
        %v1321 = vld [vmem:[%s13] sm:$0x1]
        %v1322 = vsel %vm546, %v1319, 0.0
        %1323 = vadd.xlane.f32.xlu0 %v1322
        %v1324 = vpop.xlane.xlu0 %1323
        %v1325 = vmul.f32 %v1324, %v1120
        %v1326 = vsub.f32 %v1319, %v1325
        %v1327 = vmul.f32 %v1326, %v1326
        %v1328 = vsel %vm546, %v1327, 0.0
        %1329 = vadd.xlane.f32.xlu0 %v1328
        %v1330 = vpop.xlane.xlu0 %1329
        %v1331 = vmul.f32 %v1330, %v1120
        %v1332 = vadd.f32 %v1331, 1e-05
        %v1333 = vrsqrt.pop %v1332
        %v1334 = vmul.f32 %v1326, %v1333
        %v1336 = vlaneseq
        %v1337 = vshrl.u32 %v1336, 7
        %v1338 = vsub.s32 0, %v1337
        %v1339 = vrot.slane %v1320, %v1338
        %v1341 = vmul.f32 %v1334, %v1339
        %v1343 = vlaneseq
        %v1344 = vshrl.u32 %v1343, 7
        %v1345 = vsub.s32 0, %v1344
        %v1346 = vrot.slane %v1321, %v1345
        %v1348 = vadd.f32 %v1341, %v1346
        %1349 = vst.msk [vmem:[%s517] sm:$0xff] %vm546, %v1348
        %s1350 = sand.u32 %s346, 1
        %s1351 = scalar_lea.sflag [#allocation4], %s1350
        %s1352 = sand.u32 %s346, 1
        %s1353 = smul.addr %s1352, 8
        %s1354 = scalar_lea.vmem [#allocation5], %s1353
        %s1355 = sand.u32 %s372, 1
        %s1356 = scalar_lea.sflag [#allocation7], %s1355
        %s1357 = sand.u32 %s372, 1
        %s1358 = smul.addr %s1357, 16
        %s1359 = scalar_lea.vmem [#allocation6], %s1358
        // Predicated region
        $region81: #{tpu_custom_call.1} parent=75 // pred_check
          %p1360 = pneg %p356
        $region82: #{tpu_custom_call.1} parent=75 // pred_check_branch
          %1362 = sbr.rel (%p1360) target = $region84
        $region83: #{tpu_custom_call.1} parent=75 // pred_region
          %s1364 = ssub.s32 128, 128
          %1365 = vsyncadd %s1351, %s1364
          %s1366 = smul.addr %s34, 128
          %s1367 = scalar_lea.hbm %s14, %s1366
          %s1369 = sshll.u32 %s1354, 4
          %s1370 = int_to_ptr.vmem [resolvable:$true] %s1369
          %1372 = dma.vmem_to_hbm [thread:$0]  %s1370, 128, %s1367, %s1351
        $region84: #{tpu_custom_call.1} parent=75 // pred_fallthru
          _
        // Predicated region
        $region85: #{tpu_custom_call.1} parent=75 // pred_check
          %p1373 = pneg %p382
        $region86: #{tpu_custom_call.1} parent=75 // pred_check_branch
          %1375 = sbr.rel (%p1373) target = $region88
        $region87: #{tpu_custom_call.1} parent=75 // pred_region
          %s1377 = ssub.s32 256, 256
          %1378 = vsyncadd %s1356, %s1377
          %s1379 = smul.addr %s34, 2
          %s1380 = smul.addr %s1379, 128
          %s1381 = scalar_lea.hbm %s15, %s1380
          %s1382 = sshll.u32 %s1359, 4
          %s1383 = int_to_ptr.vmem [resolvable:$true] %s1382
          %1388 = dma.vmem_to_hbm [thread:$0]  %s1383, 256, %s1381, %s1356, 128, 128, 8
        $region88: #{tpu_custom_call.1} parent=75 // pred_fallthru
          _
      $region76: #{tpu_custom_call.1} parent=5 // pred_fallthru
        _
      %p1389 = scmp.le.s32.totalorder 2, %s29
      // Predicated region
      $region89: #{tpu_custom_call.1} parent=5 // pred_check
        %p1390 = pneg %p1389
      $region90: #{tpu_custom_call.1} parent=5 // pred_check_branch
        %1392 = sbr.rel (%p1390) target = $region92
      $region91: #{tpu_custom_call.1} parent=5 // pred_region
        %s1393 = ssub.s32 %s29, 2
        // Predicated region
        $region93: #{tpu_custom_call.1} parent=91 // pred_check
          %p1394 = pneg %p362
        $region94: #{tpu_custom_call.1} parent=91 // pred_check_branch
          %1396 = sbr.rel (%p1394) target = $region96
        $region95: #{tpu_custom_call.1} parent=91 // pred_region
          %s1397 = sand.u32 %s347, 1
          %s1398 = scalar_lea.sflag [#allocation4], %s1397
          %s1399 = sand.u32 %s347, 1
          %s1400 = smul.addr %s1399, 8
          %s1401 = scalar_lea.vmem [#allocation5], %s1400
          %1402 = dma.done %s1398, 128
        $region96: #{tpu_custom_call.1} parent=91 // pred_fallthru
          _
        // Predicated region
        $region97: #{tpu_custom_call.1} parent=91 // pred_check
          %p1403 = pneg %p388
        $region98: #{tpu_custom_call.1} parent=91 // pred_check_branch
          %1405 = sbr.rel (%p1403) target = $region100
        $region99: #{tpu_custom_call.1} parent=91 // pred_region
          %s1406 = sand.u32 %s373, 1
          %s1407 = scalar_lea.sflag [#allocation7], %s1406
          %s1408 = sand.u32 %s373, 1
          %s1409 = smul.addr %s1408, 16
          %s1410 = scalar_lea.vmem [#allocation6], %s1409
          %1411 = dma.done %s1407, 256
        $region100: #{tpu_custom_call.1} parent=91 // pred_fallthru
          _
      $region92: #{tpu_custom_call.1} parent=5 // pred_fallthru
        _
    $region6: #{tpu_custom_call.1} parent=1 // loop_footer
      %s33 = sadd.s32 1, %s29
    $region7: #{tpu_custom_call.1} parent=1 // loop_footer_branch
      %28 = sbr.rel target = $region3
    $region8: #{tpu_custom_call.1} parent=1 // loop_exit
      _
    %1412 = vsyncpa [#allocation3], 1
    %s1413 = scalar_lea.sflag [#allocation3], 1
    %1414 = vsyncpa %s1413, 1
    %1415 = vsyncpa [#allocation4], 1
    %s1416 = scalar_lea.sflag [#allocation4], 1
    %1417 = vsyncpa %s1416, 1
    %1418 = vsyncpa [#allocation7], 1
    %s1419 = scalar_lea.sflag [#allocation7], 1
    %1420 = vsyncpa %s1419, 1

</llo_original>
